<compile_context>
chip_gen: v6e
topology: v6e:2x2x1
jax: 0.10.0
libtpu: 0.0.40
codegen_flags: <defaults>
</compile_context>

<pallas_src>
import math

import jax
import jax.numpy as jnp
import numpy as np
from jax.experimental import pallas as pl
from jax.experimental.pallas import tpu as pltpu


def _round_up(x, m):
    return ((x + m - 1) // m) * m


# ----------------------------------------------------------------------------
# Pallas kernel: PE construction + full MLP, all in transposed (feature, row) layout.
# ----------------------------------------------------------------------------
def _make_generator_kernel(num_extra_hidden, negative_slope=0.2):
    def kernel(wl_ref, freq_ref, zb_ref, wsin_ref, wcos_ref, *refs):
        out_ref = refs[-1]
        wb_refs = refs[:-1]          # alternating (W^T, b_col) for layers 1..N

        # ---- positional encoding (random Fourier features), transposed ----
        wl = wl_ref[0]               # (1, tile_l)  raw wavelengths (lane axis = rows)
        freqs = freq_ref[...]        # (pe_dim//2, 1), pre-scaled by 2*pi/max_wavelength
        ang = freqs * wl             # (pe_dim//2, tile_l)  outer product via broadcast
        s = jnp.sin(ang)             # EUP
        c = jnp.cos(ang)

        # ---- first hidden layer: split-weight matmuls, no concatenation ----
        zb = zb_ref[0]               # (h0, 1) = z @ Wz^T + b0 for this batch element
        h = (jnp.dot(wsin_ref[...], s, preferred_element_type=jnp.float32)
             + jnp.dot(wcos_ref[...], c, preferred_element_type=jnp.float32)
             + zb)                   # (h0, tile_l)
        h = jnp.where(h > 0, h, negative_slope * h)

        # ---- remaining hidden layers: Linear + LeakyReLU(0.2) ----
        for i in range(num_extra_hidden):
            w = wb_refs[2 * i][...]          # (out_dim, in_dim)
            b = wb_refs[2 * i + 1][...]      # (out_dim, 1)
            h = jnp.dot(w, h, preferred_element_type=jnp.float32) + b
            h = jnp.where(h > 0, h, negative_slope * h)

        # ---- final linear: lane-dense (output_dim, tile_l) result ----
        w = wb_refs[-2][...]
        b = wb_refs[-1][...]
        out = jnp.dot(w, h, preferred_element_type=jnp.float32) + b
        out_ref[0] = out.astype(out_ref.dtype)

    return kernel


# ----------------------------------------------------------------------------
# Wrapper
# ----------------------------------------------------------------------------
def generator_forward(z, wavelengths, params, *, max_wavelength, pe_dim, tile_l=512):
    """params: dict with
         'freqs'   : (pe_dim//2,) float32
         'weights' : list of (out_dim, in_dim) float32  (PyTorch nn.Linear layout)
         'biases'  : list of (out_dim,) float32
    """
    B, latent_dim = z.shape
    _, L = wavelengths.shape
    half = pe_dim // 2

    weights = params["weights"]
    biases = params["biases"]
    assert len(weights) >= 2, "need at least one hidden layer + output layer"
    num_extra_hidden = len(weights) - 2
    h0 = weights[0].shape[0]
    output_dim = weights[-1].shape[0]
    assert weights[0].shape[1] == latent_dim + pe_dim

    # ---- wavelength-row tiling: rows live on the lane axis -> multiple of 128 ----
    tile_l = max(128, _round_up(min(tile_l, _round_up(L, 128)), 128))
    L_pad = _round_up(L, tile_l)
    wl_pad = jnp.pad(wavelengths.astype(jnp.float32), ((0, 0), (0, L_pad - L)))
    wl3 = wl_pad.reshape(B, 1, L_pad)

    # ---- split first-layer weight: [Wz | Wsin | Wcos] along in_features ----
    w0 = weights[0].astype(jnp.float32)
    wz = w0[:, :latent_dim]                        # (h0, latent_dim)
    wsin = w0[:, latent_dim:latent_dim + half]     # (h0, half)
    wcos = w0[:, latent_dim + half:]               # (h0, half)

    # Per-batch z contribution + first bias, computed once (B x h0 -- tiny) so the
    # kernel only broadcasts a column over lanes (no in-kernel transpose).
    zb = z.astype(jnp.float32) @ wz.T + biases[0].astype(jnp.float32)  # (B, h0)
    zb3 = zb.reshape(B, h0, 1)

    # Frequencies pre-scaled by 2*pi / max_wavelength (folds the normalization).
    freqs_col = ((2.0 * math.pi / float(max_wavelength))
                 * params["freqs"].astype(jnp.float32)).reshape(half, 1)

    # Remaining layers: transposed weights + bias columns (resident in VMEM).
    flat_wb = []
    for w, b in zip(weights[1:], biases[1:]):
        flat_wb.append(w.astype(jnp.float32))
        flat_wb.append(b.astype(jnp.float32).reshape(-1, 1))

    grid = (B, L_pad // tile_l)

    in_specs = [
        pl.BlockSpec((1, 1, tile_l), lambda b, l: (b, 0, l)),     # raw wavelengths
        pl.BlockSpec((half, 1), lambda b, l: (0, 0)),             # scaled frequencies
        pl.BlockSpec((1, h0, 1), lambda b, l: (b, 0, 0)),         # z@Wz + b0 column
        pl.BlockSpec(wsin.shape, lambda b, l: (0, 0)),            # Wsin
        pl.BlockSpec(wcos.shape, lambda b, l: (0, 0)),            # Wcos
    ]
    for arr in flat_wb:
        in_specs.append(pl.BlockSpec(arr.shape, lambda b, l: (0, 0)))

    out_spec = pl.BlockSpec((1, output_dim, tile_l), lambda b, l: (b, 0, l))

    kernel = _make_generator_kernel(num_extra_hidden)

    out = pl.pallas_call(
        kernel,
        out_shape=jax.ShapeDtypeStruct((B, output_dim, L_pad), jnp.float32),
        grid_spec=pltpu.PrefetchScalarGridSpec(
            num_scalar_prefetch=0,
            grid=grid,
            in_specs=in_specs,
            out_specs=out_spec,
        ),
        compiler_params=pltpu.CompilerParams(
            dimension_semantics=("parallel", "parallel")),
    )(wl3, freqs_col, zb3, wsin, wcos, *flat_wb)

    # (B, output_dim, L_pad) -> (B, L, output_dim); drop padded rows.
    return jnp.swapaxes(out, 1, 2)[:, :L, :]


# ----------------------------------------------------------------------------
# Deterministic parameter init (kaiming-normal fan_out, a=0.2; biases zero)
# Weights stored in PyTorch nn.Linear layout: (out_features, in_features).
# ----------------------------------------------------------------------------
def init_generator_params(key, latent_dim, output_dim, layers, pe_dim):
    keys = jax.random.split(key, len(layers) + 2)
    freqs = jax.random.normal(keys[0], (pe_dim // 2,), dtype=jnp.float32)  # sigma=1, omega=1

    weights, biases = [], []
    in_dim = latent_dim + pe_dim
    dims = list(layers) + [output_dim]
    a = 0.2
    for i, out_dim in enumerate(dims):
        gain = math.sqrt(2.0 / (1.0 + a * a))
        std = gain / math.sqrt(out_dim)  # fan_out
        w = std * jax.random.normal(keys[i + 1], (out_dim, in_dim), dtype=jnp.float32)
        b = jnp.zeros((out_dim,), dtype=jnp.float32)
        weights.append(w)
        biases.append(b)
        in_dim = out_dim
    return {"freqs": freqs, "weights": weights, "biases": biases}


# ----------------------------------------------------------------------------
# Pure-JAX reference (mirrors the PyTorch forward) for a correctness check
# ----------------------------------------------------------------------------
def generator_reference(z, wavelengths, params, *, max_wavelength, pe_dim):
    B, latent_dim = z.shape
    _, L = wavelengths.shape
    wl = (wavelengths / max_wavelength).astype(jnp.float32)[..., None]          # (B, L, 1)
    f = params["freqs"].reshape(1, 1, pe_dim // 2)
    ang = 2.0 * math.pi * wl * f
    pe = jnp.concatenate([jnp.sin(ang), jnp.cos(ang)], axis=-1)                 # (B, L, pe_dim)
    z_rep = jnp.broadcast_to(z[:, None, :], (B, L, latent_dim))
    h = jnp.concatenate([z_rep, pe], axis=-1).reshape(B * L, -1)
    n = len(params["weights"])
    for i, (w, b) in enumerate(zip(params["weights"], params["biases"])):
        h = h @ w.T + b
        if i < n - 1:
            h = jnp.where(h > 0, h, 0.2 * h)
    return h.reshape(B, L, -1)


if __name__ == "__main__":
    # Small, forward-consistent shapes.
    latent_dim = 8
    output_dim = 1
    layers = (32, 32)
    pe_dim = 64
    max_wavelength = 17500.0
    batch = 2
    num_wavelengths = 16

    key = jax.random.PRNGKey(0)
    k_z, k_wl, k_p = jax.random.split(key, 3)

    z = jax.random.normal(k_z, (batch, latent_dim), dtype=jnp.float32)
    wavelengths = jax.random.uniform(
        k_wl, (batch, num_wavelengths), minval=3000.0, maxval=17000.0, dtype=jnp.float32
    )
    params = init_generator_params(k_p, latent_dim, output_dim, layers, pe_dim)

    spectrum = generator_forward(
        z, wavelengths, params, max_wavelength=max_wavelength, pe_dim=pe_dim
    )
    spectrum = jax.block_until_ready(spectrum)

    ref = generator_reference(
        z, wavelengths, params, max_wavelength=max_wavelength, pe_dim=pe_dim
    )
    assert spectrum.shape == (batch, num_wavelengths, output_dim)
    np.testing.assert_allclose(np.asarray(spectrum), np.asarray(ref), atol=1e-4, rtol=1e-3)

    print("KERNEL_OK")
</pallas_src>

<mosaic_0001>
module attributes {stable_mosaic.version = 11 : i64} {
  func.func @kernel(%arg0: i32, %arg1: i32, %arg2: memref<1x1x128xf32, #tpu.memory_space<vmem>>, %arg3: memref<32x1xf32, #tpu.memory_space<vmem>>, %arg4: memref<1x32x1xf32, #tpu.memory_space<vmem>>, %arg5: memref<32x32xf32, #tpu.memory_space<vmem>>, %arg6: memref<32x32xf32, #tpu.memory_space<vmem>>, %arg7: memref<32x32xf32, #tpu.memory_space<vmem>>, %arg8: memref<32x1xf32, #tpu.memory_space<vmem>>, %arg9: memref<1x32xf32, #tpu.memory_space<vmem>>, %arg10: memref<1x1xf32, #tpu.memory_space<vmem>>, %arg11: memref<1x1x128xf32, #tpu.memory_space<vmem>>) attributes {dimension_semantics = [#tpu.dimension_semantics<parallel>, #tpu.dimension_semantics<parallel>], iteration_bounds = array<i64: 2, 1>, scalar_prefetch = 0 : i64, scratch_operands = 0 : i64, tpu.core_type = #tpu.core_type<tc>, window_params = [{transform_indices = @transform_0, window_bounds = array<i64: 1, 1, 128>}, {pipeline_mode = #tpu.pipeline_mode<synchronous>, transform_indices = @transform_1, window_bounds = array<i64: 32, 1>}, {transform_indices = @transform_2, window_bounds = array<i64: 1, 32, 1>}, {pipeline_mode = #tpu.pipeline_mode<synchronous>, transform_indices = @transform_3, window_bounds = array<i64: 32, 32>}, {pipeline_mode = #tpu.pipeline_mode<synchronous>, transform_indices = @transform_4, window_bounds = array<i64: 32, 32>}, {pipeline_mode = #tpu.pipeline_mode<synchronous>, transform_indices = @transform_5, window_bounds = array<i64: 32, 32>}, {pipeline_mode = #tpu.pipeline_mode<synchronous>, transform_indices = @transform_6, window_bounds = array<i64: 32, 1>}, {pipeline_mode = #tpu.pipeline_mode<synchronous>, transform_indices = @transform_7, window_bounds = array<i64: 1, 32>}, {pipeline_mode = #tpu.pipeline_mode<synchronous>, transform_indices = @transform_8, window_bounds = array<i64: 1, 1>}, {transform_indices = @transform_9, window_bounds = array<i64: 1, 1, 128>}]} {
    %c0 = arith.constant 0 : index
    %c0_0 = arith.constant 0 : index
    %c0_1 = arith.constant 0 : index
    %0 = vector.load %arg2[%c0, %c0_0, %c0_1] : memref<1x1x128xf32, #tpu.memory_space<vmem>>, vector<1x1x128xf32>
    %1 = vector.shape_cast %0 : vector<1x1x128xf32> to vector<1x128xf32>
    %c0_2 = arith.constant 0 : index
    %c0_3 = arith.constant 0 : index
    %2 = vector.load %arg3[%c0_2, %c0_3] : memref<32x1xf32, #tpu.memory_space<vmem>>, vector<32x1xf32>
    %3 = vector.broadcast %2 : vector<32x1xf32> to vector<32x128xf32>
    %4 = vector.broadcast %1 : vector<1x128xf32> to vector<32x128xf32>
    %5 = arith.mulf %3, %4 : vector<32x128xf32>
    %6 = math.sin %5 : vector<32x128xf32>
    %7 = math.cos %5 : vector<32x128xf32>
    %c0_4 = arith.constant 0 : index
    %c0_5 = arith.constant 0 : index
    %c0_6 = arith.constant 0 : index
    %8 = vector.load %arg4[%c0_4, %c0_5, %c0_6] : memref<1x32x1xf32, #tpu.memory_space<vmem>>, vector<1x32x1xf32>
    %9 = vector.shape_cast %8 : vector<1x32x1xf32> to vector<32x1xf32>
    %c0_7 = arith.constant 0 : index
    %c0_8 = arith.constant 0 : index
    %10 = vector.load %arg5[%c0_7, %c0_8] : memref<32x32xf32, #tpu.memory_space<vmem>>, vector<32x32xf32>
    %cst = arith.constant dense<0.000000e+00> : vector<32x128xf32>
    %11 = tpu.matmul %10, %6, %cst {dimension_numbers = #tpu.dot_dimension_numbers<[1], [0], [0], [1], [0, 0, 1, 1], [], []>} : vector<32x32xf32>, vector<32x128xf32>, vector<32x128xf32> -> vector<32x128xf32>
    %c0_9 = arith.constant 0 : index
    %c0_10 = arith.constant 0 : index
    %12 = vector.load %arg6[%c0_9, %c0_10] : memref<32x32xf32, #tpu.memory_space<vmem>>, vector<32x32xf32>
    %cst_11 = arith.constant dense<0.000000e+00> : vector<32x128xf32>
    %13 = tpu.matmul %12, %7, %cst_11 {dimension_numbers = #tpu.dot_dimension_numbers<[1], [0], [0], [1], [0, 0, 1, 1], [], []>} : vector<32x32xf32>, vector<32x128xf32>, vector<32x128xf32> -> vector<32x128xf32>
    %14 = arith.addf %11, %13 : vector<32x128xf32>
    %15 = vector.broadcast %9 : vector<32x1xf32> to vector<32x128xf32>
    %16 = arith.addf %14, %15 : vector<32x128xf32>
    %cst_12 = arith.constant 0.000000e+00 : f32
    %17 = vector.broadcast %cst_12 : f32 to vector<32x128xf32>
    %18 = arith.cmpf ogt, %16, %17 : vector<32x128xf32>
    %cst_13 = arith.constant 2.000000e-01 : f32
    %19 = vector.broadcast %cst_13 : f32 to vector<32x128xf32>
    %20 = arith.mulf %19, %16 : vector<32x128xf32>
    %21 = arith.select %18, %16, %20 : vector<32x128xi1>, vector<32x128xf32>
    %c0_14 = arith.constant 0 : index
    %c0_15 = arith.constant 0 : index
    %22 = vector.load %arg7[%c0_14, %c0_15] : memref<32x32xf32, #tpu.memory_space<vmem>>, vector<32x32xf32>
    %c0_16 = arith.constant 0 : index
    %c0_17 = arith.constant 0 : index
    %23 = vector.load %arg8[%c0_16, %c0_17] : memref<32x1xf32, #tpu.memory_space<vmem>>, vector<32x1xf32>
    %cst_18 = arith.constant dense<0.000000e+00> : vector<32x128xf32>
    %24 = tpu.matmul %22, %21, %cst_18 {dimension_numbers = #tpu.dot_dimension_numbers<[1], [0], [0], [1], [0, 0, 1, 1], [], []>} : vector<32x32xf32>, vector<32x128xf32>, vector<32x128xf32> -> vector<32x128xf32>
    %25 = vector.broadcast %23 : vector<32x1xf32> to vector<32x128xf32>
    %26 = arith.addf %24, %25 : vector<32x128xf32>
    %cst_19 = arith.constant 0.000000e+00 : f32
    %27 = vector.broadcast %cst_19 : f32 to vector<32x128xf32>
    %28 = arith.cmpf ogt, %26, %27 : vector<32x128xf32>
    %cst_20 = arith.constant 2.000000e-01 : f32
    %29 = vector.broadcast %cst_20 : f32 to vector<32x128xf32>
    %30 = arith.mulf %29, %26 : vector<32x128xf32>
    %31 = arith.select %28, %26, %30 : vector<32x128xi1>, vector<32x128xf32>
    %c0_21 = arith.constant 0 : index
    %c0_22 = arith.constant 0 : index
    %32 = vector.load %arg9[%c0_21, %c0_22] : memref<1x32xf32, #tpu.memory_space<vmem>>, vector<1x32xf32>
    %c0_23 = arith.constant 0 : index
    %c0_24 = arith.constant 0 : index
    %33 = vector.load %arg10[%c0_23, %c0_24] : memref<1x1xf32, #tpu.memory_space<vmem>>, vector<1x1xf32>
    %cst_25 = arith.constant dense<0.000000e+00> : vector<1x128xf32>
    %34 = tpu.matmul %32, %31, %cst_25 {dimension_numbers = #tpu.dot_dimension_numbers<[1], [0], [0], [1], [0, 0, 1, 1], [], []>} : vector<1x32xf32>, vector<32x128xf32>, vector<1x128xf32> -> vector<1x128xf32>
    %35 = vector.broadcast %33 : vector<1x1xf32> to vector<1x128xf32>
    %36 = arith.addf %34, %35 : vector<1x128xf32>
    %c0_26 = arith.constant 0 : index
    %c0_27 = arith.constant 0 : index
    %c0_28 = arith.constant 0 : index
    %37 = vector.load %arg11[%c0_26, %c0_27, %c0_28] : memref<1x1x128xf32, #tpu.memory_space<vmem>>, vector<1x1x128xf32>
    %38 = vector.shape_cast %37 : vector<1x1x128xf32> to vector<1x128xf32>
    %39 = vector.shape_cast %36 : vector<1x128xf32> to vector<1x1x128xf32>
    tpu.vector_store %arg11[%c0_26, %c0_27, %c0_28], %39 {strides = array<i32>} : memref<1x1x128xf32, #tpu.memory_space<vmem>>, vector<1x1x128xf32>,
    return
  }
  func.func @transform_0(%arg0: i32, %arg1: i32) -> (i32, i32, i32) {
    %c0_i32 = arith.constant 0 : i32
    %c0_i32_0 = arith.constant 0 : i32
    return %arg0, %c0_i32, %arg1 : i32, i32, i32
  }
  func.func @transform_1(%arg0: i32, %arg1: i32) -> (i32, i32) {
    %c0_i32 = arith.constant 0 : i32
    %c0_i32_0 = arith.constant 0 : i32
    %c0_i32_1 = arith.constant 0 : i32
    return %c0_i32, %c0_i32_0 : i32, i32
  }
  func.func @transform_2(%arg0: i32, %arg1: i32) -> (i32, i32, i32) {
    %c0_i32 = arith.constant 0 : i32
    %c0_i32_0 = arith.constant 0 : i32
    %c0_i32_1 = arith.constant 0 : i32
    return %arg0, %c0_i32, %c0_i32_0 : i32, i32, i32
  }
  func.func @transform_3(%arg0: i32, %arg1: i32) -> (i32, i32) {
    %c0_i32 = arith.constant 0 : i32
    %c0_i32_0 = arith.constant 0 : i32
    %c0_i32_1 = arith.constant 0 : i32
    return %c0_i32, %c0_i32_0 : i32, i32
  }
  func.func @transform_4(%arg0: i32, %arg1: i32) -> (i32, i32) {
    %c0_i32 = arith.constant 0 : i32
    %c0_i32_0 = arith.constant 0 : i32
    %c0_i32_1 = arith.constant 0 : i32
    return %c0_i32, %c0_i32_0 : i32, i32
  }
  func.func @transform_5(%arg0: i32, %arg1: i32) -> (i32, i32) {
    %c0_i32 = arith.constant 0 : i32
    %c0_i32_0 = arith.constant 0 : i32
    %c0_i32_1 = arith.constant 0 : i32
    return %c0_i32, %c0_i32_0 : i32, i32
  }
  func.func @transform_6(%arg0: i32, %arg1: i32) -> (i32, i32) {
    %c0_i32 = arith.constant 0 : i32
    %c0_i32_0 = arith.constant 0 : i32
    %c0_i32_1 = arith.constant 0 : i32
    return %c0_i32, %c0_i32_0 : i32, i32
  }
  func.func @transform_7(%arg0: i32, %arg1: i32) -> (i32, i32) {
    %c0_i32 = arith.constant 0 : i32
    %c0_i32_0 = arith.constant 0 : i32
    %c0_i32_1 = arith.constant 0 : i32
    return %c0_i32, %c0_i32_0 : i32, i32
  }
  func.func @transform_8(%arg0: i32, %arg1: i32) -> (i32, i32) {
    %c0_i32 = arith.constant 0 : i32
    %c0_i32_0 = arith.constant 0 : i32
    %c0_i32_1 = arith.constant 0 : i32
    return %c0_i32, %c0_i32_0 : i32, i32
  }
  func.func @transform_9(%arg0: i32, %arg1: i32) -> (i32, i32, i32) {
    %c0_i32 = arith.constant 0 : i32
    %c0_i32_0 = arith.constant 0 : i32
    return %arg0, %c0_i32, %arg1 : i32, i32, i32
  }
}

</mosaic_0001>

<llo_original>
// kernel: tpu_custom_call.1
$region0: #{tpu_custom_call.1}
  #allocation0 [shape = 'u32[]', space=smem, size = 0x4, offset = 0x4, fixed_abs, tag = 'smem constant byte address 0x4 - core index']
  #allocation1 [shape = 'u32[144,128]{1,0:T(1,128)}', space=vmem, size = 0x12000, scoped, tag = 'internal scratch']
  #allocation2 [shape = 'f32[1,1]{1,0:T(1,128)S(1)}', space=vmem, size = 0x200, scoped, tag = 'scoped memory for tpu_custom_call.1']
  %s0 = inlined_call_operand.vmem [shape: f32[2,1,128], index: 0, kind: input, shape index: {}]
  %s1 = inlined_call_operand.vmem [shape: f32[32,1], index: 1, kind: input, shape index: {}]
  %s2 = inlined_call_operand.vmem [shape: f32[2,32,1], index: 2, kind: input, shape index: {}]
  %s3 = inlined_call_operand.vmem [shape: f32[32,32], index: 3, kind: input, shape index: {}]
  %s4 = inlined_call_operand.vmem [shape: f32[32,32], index: 4, kind: input, shape index: {}]
  %s5 = inlined_call_operand.vmem [shape: f32[32,32], index: 5, kind: input, shape index: {}]
  %s6 = inlined_call_operand.vmem [shape: f32[32,1], index: 6, kind: input, shape index: {}]
  %s7 = inlined_call_operand.vmem [shape: f32[1,32], index: 7, kind: input, shape index: {}]
  %s8 = inlined_call_operand.<no memory space> [shape: f32[1,1], index: 8, kind: input, shape index: {}]
  %s9 = inlined_call_operand.hbm [shape: f32[2,1,128], index: 9, kind: output, shape index: {}]
  %s10 = sld [smem:[#allocation0]]
  $region69: #{tpu_custom_call.1} parent=0
    _
  %s12 = ssub.s32 1, %s10
  %s13 = scalar_select 0, %s12, %s10
  %v14 = vstv %s8
  %15 = vst [vmem:[#allocation2] sm:$0x1] %v14
  $region1: #{tpu_custom_call.1} parent=0
    #allocation3 [shape = 'u8[1024]{0}', space=vmem, size = 0x400, scoped, tag = 'output window, operand 0']
    #allocation4 [shape = 's32[2]{0}', space=sflag, size = 0x8, scoped, tag = 'scoped memory for tpu_custom_call.1']
    %16 = vsyncpa [#allocation4], 0
    %s17 = scalar_lea.sflag [#allocation4], 1
    %18 = vsyncpa %s17, 0
    loop: start=0, step=1, limit=4
    $region2: #{tpu_custom_call.1} parent=1 // loop_pre_header
      _
    $region3: #{tpu_custom_call.1} parent=1 // loop_header
      %s20 = sphi 0, %s24
      %p21 = scmp.ge.s32.totalorder %s20, 4
      %s27 = sphi 0, %s39
      %s28 = sphi 0, %s35
      %s29 = sphi 0, %s27
      %s30 = sphi 0, %s28
      %s31 = sphi 0, %s29
      %s32 = sphi 0, %s30
      %s44 = sphi 0, %s46
      %s47 = sphi 0, %s44
      %s48 = sphi 0, %s47
      %s64 = sphi 0, %s48
      %s68 = sphi 0, %s68
      %s70 = sphi 0, %s68
      %s71 = sphi 0, %s70
      %s85 = sphi 0, %s71
      %s91 = sphi 0, %s93
      %s94 = sphi 0, %s91
      %s95 = sphi 0, %s94
      %s111 = sphi 0, %s95
      %s115 = sphi 0, %s115
      %s117 = sphi 0, %s115
      %s118 = sphi 0, %s117
      %s132 = sphi 0, %s118
      %s136 = sphi 0, %s136
      %s138 = sphi 0, %s136
      %s139 = sphi 0, %s138
      %s153 = sphi 0, %s139
      %s157 = sphi 0, %s157
      %s159 = sphi 0, %s157
      %s160 = sphi 0, %s159
      %s174 = sphi 0, %s160
      %s178 = sphi 0, %s178
      %s180 = sphi 0, %s178
      %s181 = sphi 0, %s180
      %s195 = sphi 0, %s181
      %s199 = sphi 0, %s199
      %s201 = sphi 0, %s199
      %s202 = sphi 0, %s201
      %s216 = sphi 0, %s202
      %s220 = sphi 0, %s220
      %s222 = sphi 0, %s220
      %s223 = sphi 0, %s222
      %s237 = sphi 0, %s223
      %s245 = sphi 0, %s247
      %s248 = sphi 0, %s245
      %s249 = sphi 0, %s248
      %s265 = sphi 0, %s249
    $region4: #{tpu_custom_call.1} parent=1 // loop_header_branch
      %23 = sbr.rel (%p21) target = $region8
    $region5: #{tpu_custom_call.1} parent=1 // loop_body
      %s25 = ssub.s32 %s20, 1
      %s26 = ssub.s32 %s20, 2
      %s33 = sadd.s32 1, %s28
      %p34 = scmp.ge.s32.totalorder %s33, 1
      %s35 = scalar_select %p34, 0, %s33
      %s36 = sadd.s32 1, %s27
      %s37 = scalar_select %p34, %s36, %s27
      %p38 = scmp.ge.s32.totalorder %s37, 2
      %s39 = scalar_select %p38, 0, %s37
      %s40 = ssub.s32 %s27, %s39
      %s41 = ssub.s32 %s28, %s35
      %s42 = sor.u32 %s40, %s41
      %p43 = scmp.eq.s32.totalorder %s42, 0
      %s45 = sadd.s32 %s44, 1
      %s46 = scalar_select %p43, %s44, %s45
      %p49 = pneg %p43
      %p50 = scmp.eq.s32.totalorder %s20, 1
      %p51 = por %p49, %p50
      %p52 = scmp.ne.s32.totalorder %s44, %s47
      %p53 = scmp.eq.s32.totalorder %s20, 0
      %p54 = por %p52, %p53
      %p55 = scmp.ne.s32.totalorder %s44, %s47
      %p56 = scmp.eq.s32.totalorder %s25, 1
      %p57 = por %p55, %p56
      %p58 = scmp.ne.s32.totalorder %s47, %s48
      %p59 = scmp.eq.s32.totalorder %s25, 0
      %p60 = por %p58, %p59
      %p61 = scmp.ne.s32.totalorder %s47, %s48
      %p62 = scmp.eq.s32.totalorder %s26, 1
      %p63 = por %p61, %p62
      %p65 = scmp.ne.s32.totalorder %s48, %s64
      %p66 = scmp.eq.s32.totalorder %s26, 0
      %p67 = por %p65, %p66
      %s69 = sadd.s32 %s68, 1
      %p72 = scmp.eq.s32.totalorder %s20, 1
      %p73 = scmp.ne.s32.totalorder %s68, %s70
      %p74 = scmp.eq.s32.totalorder %s20, 0
      %p75 = por %p73, %p74
      %p76 = scmp.ne.s32.totalorder %s68, %s70
      %p77 = scmp.eq.s32.totalorder %s25, 1
      %p78 = por %p76, %p77
      %p79 = scmp.ne.s32.totalorder %s70, %s71
      %p80 = scmp.eq.s32.totalorder %s25, 0
      %p81 = por %p79, %p80
      %p82 = scmp.ne.s32.totalorder %s70, %s71
      %p83 = scmp.eq.s32.totalorder %s26, 1
      %p84 = por %p82, %p83
      %p86 = scmp.ne.s32.totalorder %s71, %s85
      %p87 = scmp.eq.s32.totalorder %s26, 0
      %p88 = por %p86, %p87
      %s89 = ssub.s32 %s27, %s39
      %p90 = scmp.eq.s32.totalorder %s89, 0
      %s92 = sadd.s32 %s91, 1
      %s93 = scalar_select %p90, %s91, %s92
      %p96 = pneg %p90
      %p97 = scmp.eq.s32.totalorder %s20, 1
      %p98 = por %p96, %p97
      %p99 = scmp.ne.s32.totalorder %s91, %s94
      %p100 = scmp.eq.s32.totalorder %s20, 0
      %p101 = por %p99, %p100
      %p102 = scmp.ne.s32.totalorder %s91, %s94
      %p103 = scmp.eq.s32.totalorder %s25, 1
      %p104 = por %p102, %p103
      %p105 = scmp.ne.s32.totalorder %s94, %s95
      %p106 = scmp.eq.s32.totalorder %s25, 0
      %p107 = por %p105, %p106
      %p108 = scmp.ne.s32.totalorder %s94, %s95
      %p109 = scmp.eq.s32.totalorder %s26, 1
      %p110 = por %p108, %p109
      %p112 = scmp.ne.s32.totalorder %s95, %s111
      %p113 = scmp.eq.s32.totalorder %s26, 0
      %p114 = por %p112, %p113
      %s116 = sadd.s32 %s115, 1
      %p119 = scmp.eq.s32.totalorder %s20, 1
      %p120 = scmp.ne.s32.totalorder %s115, %s117
      %p121 = scmp.eq.s32.totalorder %s20, 0
      %p122 = por %p120, %p121
      %p123 = scmp.ne.s32.totalorder %s115, %s117
      %p124 = scmp.eq.s32.totalorder %s25, 1
      %p125 = por %p123, %p124
      %p126 = scmp.ne.s32.totalorder %s117, %s118
      %p127 = scmp.eq.s32.totalorder %s25, 0
      %p128 = por %p126, %p127
      %p129 = scmp.ne.s32.totalorder %s117, %s118
      %p130 = scmp.eq.s32.totalorder %s26, 1
      %p131 = por %p129, %p130
      %p133 = scmp.ne.s32.totalorder %s118, %s132
      %p134 = scmp.eq.s32.totalorder %s26, 0
      %p135 = por %p133, %p134
      %s137 = sadd.s32 %s136, 1
      %p140 = scmp.eq.s32.totalorder %s20, 1
      %p141 = scmp.ne.s32.totalorder %s136, %s138
      %p142 = scmp.eq.s32.totalorder %s20, 0
      %p143 = por %p141, %p142
      %p144 = scmp.ne.s32.totalorder %s136, %s138
      %p145 = scmp.eq.s32.totalorder %s25, 1
      %p146 = por %p144, %p145
      %p147 = scmp.ne.s32.totalorder %s138, %s139
      %p148 = scmp.eq.s32.totalorder %s25, 0
      %p149 = por %p147, %p148
      %p150 = scmp.ne.s32.totalorder %s138, %s139
      %p151 = scmp.eq.s32.totalorder %s26, 1
      %p152 = por %p150, %p151
      %p154 = scmp.ne.s32.totalorder %s139, %s153
      %p155 = scmp.eq.s32.totalorder %s26, 0
      %p156 = por %p154, %p155
      %s158 = sadd.s32 %s157, 1
      %p161 = scmp.eq.s32.totalorder %s20, 1
      %p162 = scmp.ne.s32.totalorder %s157, %s159
      %p163 = scmp.eq.s32.totalorder %s20, 0
      %p164 = por %p162, %p163
      %p165 = scmp.ne.s32.totalorder %s157, %s159
      %p166 = scmp.eq.s32.totalorder %s25, 1
      %p167 = por %p165, %p166
      %p168 = scmp.ne.s32.totalorder %s159, %s160
      %p169 = scmp.eq.s32.totalorder %s25, 0
      %p170 = por %p168, %p169
      %p171 = scmp.ne.s32.totalorder %s159, %s160
      %p172 = scmp.eq.s32.totalorder %s26, 1
      %p173 = por %p171, %p172
      %p175 = scmp.ne.s32.totalorder %s160, %s174
      %p176 = scmp.eq.s32.totalorder %s26, 0
      %p177 = por %p175, %p176
      %s179 = sadd.s32 %s178, 1
      %p182 = scmp.eq.s32.totalorder %s20, 1
      %p183 = scmp.ne.s32.totalorder %s178, %s180
      %p184 = scmp.eq.s32.totalorder %s20, 0
      %p185 = por %p183, %p184
      %p186 = scmp.ne.s32.totalorder %s178, %s180
      %p187 = scmp.eq.s32.totalorder %s25, 1
      %p188 = por %p186, %p187
      %p189 = scmp.ne.s32.totalorder %s180, %s181
      %p190 = scmp.eq.s32.totalorder %s25, 0
      %p191 = por %p189, %p190
      %p192 = scmp.ne.s32.totalorder %s180, %s181
      %p193 = scmp.eq.s32.totalorder %s26, 1
      %p194 = por %p192, %p193
      %p196 = scmp.ne.s32.totalorder %s181, %s195
      %p197 = scmp.eq.s32.totalorder %s26, 0
      %p198 = por %p196, %p197
      %s200 = sadd.s32 %s199, 1
      %p203 = scmp.eq.s32.totalorder %s20, 1
      %p204 = scmp.ne.s32.totalorder %s199, %s201
      %p205 = scmp.eq.s32.totalorder %s20, 0
      %p206 = por %p204, %p205
      %p207 = scmp.ne.s32.totalorder %s199, %s201
      %p208 = scmp.eq.s32.totalorder %s25, 1
      %p209 = por %p207, %p208
      %p210 = scmp.ne.s32.totalorder %s201, %s202
      %p211 = scmp.eq.s32.totalorder %s25, 0
      %p212 = por %p210, %p211
      %p213 = scmp.ne.s32.totalorder %s201, %s202
      %p214 = scmp.eq.s32.totalorder %s26, 1
      %p215 = por %p213, %p214
      %p217 = scmp.ne.s32.totalorder %s202, %s216
      %p218 = scmp.eq.s32.totalorder %s26, 0
      %p219 = por %p217, %p218
      %s221 = sadd.s32 %s220, 1
      %p224 = scmp.eq.s32.totalorder %s20, 1
      %p225 = scmp.ne.s32.totalorder %s220, %s222
      %p226 = scmp.eq.s32.totalorder %s20, 0
      %p227 = por %p225, %p226
      %p228 = scmp.ne.s32.totalorder %s220, %s222
      %p229 = scmp.eq.s32.totalorder %s25, 1
      %p230 = por %p228, %p229
      %p231 = scmp.ne.s32.totalorder %s222, %s223
      %p232 = scmp.eq.s32.totalorder %s25, 0
      %p233 = por %p231, %p232
      %p234 = scmp.ne.s32.totalorder %s222, %s223
      %p235 = scmp.eq.s32.totalorder %s26, 1
      %p236 = por %p234, %p235
      %p238 = scmp.ne.s32.totalorder %s223, %s237
      %p239 = scmp.eq.s32.totalorder %s26, 0
      %p240 = por %p238, %p239
      %s241 = ssub.s32 %s27, %s39
      %s242 = ssub.s32 %s28, %s35
      %s243 = sor.u32 %s241, %s242
      %p244 = scmp.eq.s32.totalorder %s243, 0
      %s246 = sadd.s32 %s245, 1
      %s247 = scalar_select %p244, %s245, %s246
      %p250 = pneg %p244
      %p251 = scmp.eq.s32.totalorder %s20, 1
      %p252 = por %p250, %p251
      %p253 = scmp.ne.s32.totalorder %s245, %s248
      %p254 = scmp.eq.s32.totalorder %s20, 0
      %p255 = por %p253, %p254
      %p256 = scmp.ne.s32.totalorder %s245, %s248
      %p257 = scmp.eq.s32.totalorder %s25, 1
      %p258 = por %p256, %p257
      %p259 = scmp.ne.s32.totalorder %s248, %s249
      %p260 = scmp.eq.s32.totalorder %s25, 0
      %p261 = por %p259, %p260
      %p262 = scmp.ne.s32.totalorder %s248, %s249
      %p263 = scmp.eq.s32.totalorder %s26, 1
      %p264 = por %p262, %p263
      %p266 = scmp.ne.s32.totalorder %s249, %s265
      %p267 = scmp.eq.s32.totalorder %s26, 0
      %p268 = por %p266, %p267
      %p269 = scmp.le.s32.totalorder 1, %s20
      %p270 = scmp.lt.s32.totalorder %s20, 3
      %p271 = pnand %p269, %p270
      %p272 = pneg %p271
      // Predicated region
      $region9: #{tpu_custom_call.1} parent=5 // pred_check
        _
      $region10: #{tpu_custom_call.1} parent=5 // pred_check_branch
        %274 = sbr.rel (%p271) target = $region12
      $region11: #{tpu_custom_call.1} parent=5 // pred_region
        %s275 = ssub.s32 %s20, 1
        // Predicated region
        $region13: #{tpu_custom_call.1} parent=11 // pred_check
          %p276 = pneg %p81
        $region14: #{tpu_custom_call.1} parent=11 // pred_check_branch
          %278 = sbr.rel (%p276) target = $region16
        $region15: #{tpu_custom_call.1} parent=11 // pred_region
          _
        $region16: #{tpu_custom_call.1} parent=11 // pred_fallthru
          _
        // Predicated region
        $region17: #{tpu_custom_call.1} parent=11 // pred_check
          %p279 = pneg %p128
        $region18: #{tpu_custom_call.1} parent=11 // pred_check_branch
          %281 = sbr.rel (%p279) target = $region20
        $region19: #{tpu_custom_call.1} parent=11 // pred_region
          _
        $region20: #{tpu_custom_call.1} parent=11 // pred_fallthru
          _
        // Predicated region
        $region21: #{tpu_custom_call.1} parent=11 // pred_check
          %p282 = pneg %p149
        $region22: #{tpu_custom_call.1} parent=11 // pred_check_branch
          %284 = sbr.rel (%p282) target = $region24
        $region23: #{tpu_custom_call.1} parent=11 // pred_region
          _
        $region24: #{tpu_custom_call.1} parent=11 // pred_fallthru
          _
        // Predicated region
        $region25: #{tpu_custom_call.1} parent=11 // pred_check
          %p285 = pneg %p170
        $region26: #{tpu_custom_call.1} parent=11 // pred_check_branch
          %287 = sbr.rel (%p285) target = $region28
        $region27: #{tpu_custom_call.1} parent=11 // pred_region
          _
        $region28: #{tpu_custom_call.1} parent=11 // pred_fallthru
          _
        // Predicated region
        $region29: #{tpu_custom_call.1} parent=11 // pred_check
          %p288 = pneg %p191
        $region30: #{tpu_custom_call.1} parent=11 // pred_check_branch
          %290 = sbr.rel (%p288) target = $region32
        $region31: #{tpu_custom_call.1} parent=11 // pred_region
          _
        $region32: #{tpu_custom_call.1} parent=11 // pred_fallthru
          _
        // Predicated region
        $region33: #{tpu_custom_call.1} parent=11 // pred_check
          %p291 = pneg %p212
        $region34: #{tpu_custom_call.1} parent=11 // pred_check_branch
          %293 = sbr.rel (%p291) target = $region36
        $region35: #{tpu_custom_call.1} parent=11 // pred_region
          _
        $region36: #{tpu_custom_call.1} parent=11 // pred_fallthru
          _
        // Predicated region
        $region37: #{tpu_custom_call.1} parent=11 // pred_check
          %p294 = pneg %p233
        $region38: #{tpu_custom_call.1} parent=11 // pred_check_branch
          %296 = sbr.rel (%p294) target = $region40
        $region39: #{tpu_custom_call.1} parent=11 // pred_region
          _
        $region40: #{tpu_custom_call.1} parent=11 // pred_fallthru
          _
      $region12: #{tpu_custom_call.1} parent=5 // pred_fallthru
        _
      %p297 = scmp.lt.s32.totalorder %s20, 2
      // Predicated region
      $region41: #{tpu_custom_call.1} parent=5 // pred_check
        %p298 = pneg %p297
      $region42: #{tpu_custom_call.1} parent=5 // pred_check_branch
        %300 = sbr.rel (%p298) target = $region44
      $region43: #{tpu_custom_call.1} parent=5 // pred_region
        // Predicated region
        $region45: #{tpu_custom_call.1} parent=43 // pred_check
          %p301 = pneg %p54
        $region46: #{tpu_custom_call.1} parent=43 // pred_check_branch
          %303 = sbr.rel (%p301) target = $region48
        $region47: #{tpu_custom_call.1} parent=43 // pred_region
          %p304 = scmp.lt.s32.totalorder %s27, 1
          %s305 = scalar_select %p304, %s27, 1
          %p306 = scmp.lt.s32.totalorder %s28, 0
          %s307 = scalar_select %p306, %s28, 0
          %s308 = sadd.s32 %s307, %s305
          %s309 = scalar_lea.vmem %s0, %s308
        $region48: #{tpu_custom_call.1} parent=43 // pred_fallthru
          _
        // Predicated region
        $region49: #{tpu_custom_call.1} parent=43 // pred_check
          %p310 = pneg %p101
        $region50: #{tpu_custom_call.1} parent=43 // pred_check_branch
          %312 = sbr.rel (%p310) target = $region52
        $region51: #{tpu_custom_call.1} parent=43 // pred_region
          %p313 = scmp.lt.s32.totalorder %s27, 1
          %s314 = scalar_select %p313, %s27, 1
          %s315 = smul.addr %s314, 4
          %s316 = smul.addr %s315, 8
          %s317 = scalar_lea.vmem %s2, %s316
        $region52: #{tpu_custom_call.1} parent=43 // pred_fallthru
          _
      $region44: #{tpu_custom_call.1} parent=5 // pred_fallthru
        _
      %p318 = scmp.le.s32.totalorder 1, %s20
      %p319 = scmp.lt.s32.totalorder %s20, 3
      %p320 = pnand %p318, %p319
      %p321 = pneg %p320
      // Predicated region
      $region53: #{tpu_custom_call.1} parent=5 // pred_check
        _
      $region54: #{tpu_custom_call.1} parent=5 // pred_check_branch
        %323 = sbr.rel (%p320) target = $region56
      $region55: #{tpu_custom_call.1} parent=5 // pred_region
        %s324 = ssub.s32 %s20, 1
        %p325 = scmp.lt.s32.totalorder %s29, 1
        %s326 = scalar_select %p325, %s29, 1
        %p327 = scmp.lt.s32.totalorder %s30, 0
        %s328 = scalar_select %p327, %s30, 0
        %s329 = sadd.s32 %s328, %s326
        %s330 = scalar_lea.vmem %s0, %s329
        %p331 = pneg %p60
        %p332 = pneg %p57
        %p333 = pneg %p81
        %p334 = pneg %p78
        %p335 = scmp.lt.s32.totalorder %s29, 1
        %s336 = scalar_select %p335, %s29, 1
        %s337 = smul.addr %s336, 4
        %s338 = smul.addr %s337, 8
        %s339 = scalar_lea.vmem %s2, %s338
        %p340 = pneg %p107
        %p341 = pneg %p104
        %p342 = pneg %p128
        %p343 = pneg %p125
        %p344 = pneg %p149
        %p345 = pneg %p146
        %p346 = pneg %p170
        %p347 = pneg %p167
        %p348 = pneg %p191
        %p349 = pneg %p188
        %p350 = pneg %p212
        %p351 = pneg %p209
        %p352 = pneg %p233
        %p353 = pneg %p230
        %p354 = pneg %p261
        %p355 = pneg %p258
        %s356 = sand.u32 %s248, 1
        %s357 = scalar_lea.sflag [#allocation4], %s356
        %s358 = sand.u32 %s248, 1
        %s359 = scalar_lea.vmem [#allocation3], %s358
        %p360 = scmp.lt.s32.totalorder %s29, 1
        %s361 = scalar_select %p360, %s29, 1
        %p362 = scmp.lt.s32.totalorder %s30, 0
        %s363 = scalar_select %p362, %s30, 0
        %s364 = sadd.s32 %s363, %s361
        %s365 = scalar_lea.vmem %s0, %s364
        %p366 = scmp.lt.s32.totalorder %s29, 1
        %s367 = scalar_select %p366, %s29, 1
        %s368 = smul.addr %s367, 4
        %s369 = smul.addr %s368, 8
        %s370 = scalar_lea.vmem %s2, %s369
        %v371 = vld [vmem:[%s365] sm:$0x1]
        %v372 = vld [vmem:[%s1] sm:$0xff]
        %v373 = vld [vmem:[%s1 + $0x8] sm:$0xff]
        %v374 = vld [vmem:[%s1 + $0x10] sm:$0xff]
        %v375 = vld [vmem:[%s1 + $0x18] sm:$0xff]
        %377 = vset.pattern.permute.xlu0 0
        %378 = vperm.xlu0 %377, %v372
        %v379 = vpop.permute.xlu0 %378
        %382 = vset.pattern.permute.xlu0 0
        %383 = vperm.xlu0 %382, %v373
        %v384 = vpop.permute.xlu0 %383
        %387 = vset.pattern.permute.xlu0 0
        %388 = vperm.xlu0 %387, %v374
        %v389 = vpop.permute.xlu0 %388
        %392 = vset.pattern.permute.xlu0 0
        %393 = vperm.xlu0 %392, %v375
        %v394 = vpop.permute.xlu0 %393
        %v397 = vlaneseq
        %v398 = vshrl.u32 %v397, 7
        %v399 = vsub.s32 0, %v398
        %v400 = vrot.slane %v371, %v399
        %v402 = vmul.f32 %v379, %v400
        %v403 = vmul.f32 %v384, %v400
        %v404 = vmul.f32 %v389, %v400
        %v405 = vmul.f32 %v394, %v400
        %v406 = vand.u32 2147483647, %v402
        %vm407 = vcmp.le.f32.partialorder %v406, 0.7853982
        %vm408 = vcmp.lt.s32.totalorder %v402, 0
        %v409 = vand.u32 %v402, 2139095040
        %v410 = vshrl.u32 %v409, 23
        %v411 = vsub.s32 %v410, 127
        %v412 = vand.u32 2147483647, %v402
        %v413 = vand.u32 %v412, 8388607
        %v414 = vor.u32 %v413, 8388608
        %v415 = vsub.s32 0, %v414
        %v416 = vadd.s32 %v411, 1
        %vm417 = vcmp.gt.s32.totalorder %v416, 0
        %v418 = vsel %vm417, %v416, 0
        %v419 = vshrl.u32 %v418, 5
        %v420 = vand.u32 %v418, 31
        %v421 = vsub.s32 32, %v420
        %v422 = vshrl.u32 683565275, %v421
        %v423 = vshll.u32 683565275, %v420
        %v424 = vshrl.u32 2475754826, %v421
        %v425 = vor.u32 %v423, %v424
        %v426 = vshll.u32 2475754826, %v420
        %v427 = vshrl.u32 2131351028, %v421
        %v428 = vor.u32 %v426, %v427
        %v429 = vshll.u32 2131351028, %v420
        %v430 = vshrl.u32 2102212464, %v421
        %v431 = vor.u32 %v429, %v430
        %v432 = vshll.u32 2102212464, %v420
        %v433 = vshrl.u32 920167782, %v421
        %v434 = vor.u32 %v432, %v433
        %v435 = vshll.u32 920167782, %v420
        %v436 = vshrl.u32 1326507024, %v421
        %v437 = vor.u32 %v435, %v436
        %vm438 = vcmp.lt.s32.totalorder %v419, 1
        %vm439 = vcmp.lt.s32.totalorder %v419, 2
        %vm440 = vcmp.lt.s32.totalorder %v419, 3
        %vm441 = vcmp.lt.s32.totalorder %v419, 4
        %v442 = vsel %vm438, %v422, %v425
        %v443 = vsel %vm441, %v431, 2102212464
        %v444 = vsel %vm440, %v428, %v443
        %v445 = vsel %vm439, %v442, %v444
        %v446 = vsel %vm438, %v425, %v428
        %v447 = vsel %vm441, %v434, 920167782
        %v448 = vsel %vm440, %v431, %v447
        %v449 = vsel %vm439, %v446, %v448
        %v450 = vsel %vm438, %v428, %v431
        %v451 = vsel %vm441, %v437, 1326507024
        %v452 = vsel %vm440, %v434, %v451
        %v453 = vsel %vm439, %v450, %v452
        %v454 = vshll.u32 %v414, 8
        %v455 = vmul.u32.u64.compose %v454, %v453
        %v456 = vextract.low.u32 %v455
        %v457 = vextract.high.u32 %v455
        %v458 = vmul.u32.u64.compose %v454, %v449
        %v459 = vextract.low.u32 %v458
        %v460 = vextract.high.u32 %v458
        %v461 = vmul.u32 %v454, %v445
        %v462 = vadd.s32 %v457, %v459
        %vm463 = vc.u32 %v457, %v459
        %v464 = vadd.s32 %v460, 1
        %v465 = vsel %vm463, %v464, %v460
        %v466 = vadd.s32 %v461, %v465
        %v467 = vadd.s32 %v466, 536870912
        %v468 = vshrl.u32 %v467, 30
        %v469 = vshll.u32 %v468, 30
        %v470 = vsub.s32 %v466, %v469
        %vm471 = vcmp.lt.s32.totalorder %v470, 0
        %v472 = vsub.s32 0, %v470
        %v473 = vsel %vm471, %v472, %v470
        %v474 = vclz %v473
        %v475 = vsub.s32 %v474, 2
        %vm476 = vcmp.gt.s32.totalorder 0, %v475
        %v477 = vsel %vm476, 0, %v475
        %v478 = vsub.s32 32, %v477
        %v479 = vshll.u32 %v470, %v477
        %v480 = vshrl.u32 %v462, %v478
        %v481 = vor.u32 %v479, %v480
        %v482 = vsub.s32 4294967266, %v477
        %v483 = vadd.s32 %v482, 127
        %v484 = vshll.u32 %v483, 23
        %v485 = vor.u32 4788187, %v484
        %v486 = vand.u32 2147483647, %v485
        %v488 = vcvt.s32.f32 %v481
        %v489 = vmul.f32 %v488, %v486
        %v490 = vxor.u32 %v489, 2147483648
        %v491 = vsel %vm408, %v490, %v489
        %v492 = vsub.s32 4, %v468
        %v493 = vsel %vm408, %v492, %v468
        %v494 = vsel %vm407, %v402, %v491
        %v495 = vsel %vm407, 0, %v493
        %v496 = vcosq.f32.pop %v494
        %v497 = vsinq.f32.pop %v494
        %vm498 = vweird.f32 %v402
        %v499 = vadd.s32 %v495, 3
        %v500 = vand.u32 %v499, 3
        %vm501 = vcmp.lt.s32.totalorder %v500, 2
        %vm502 = vcmp.eq.s32.totalorder %v500, 0
        %v503 = vxor.u32 %v497, 2147483648
        %v504 = vsel %vm502, %v496, %v503
        %vm505 = vcmp.eq.s32.totalorder %v500, 2
        %v506 = vxor.u32 %v496, 2147483648
        %v507 = vsel %vm505, %v506, %v497
        %v508 = vsel %vm501, %v504, %v507
        %v509 = vsel %vm498, nan, %v508
        %v510 = vand.u32 2147483647, %v403
        %vm511 = vcmp.le.f32.partialorder %v510, 0.7853982
        %vm512 = vcmp.lt.s32.totalorder %v403, 0
        %v513 = vand.u32 %v403, 2139095040
        %v514 = vshrl.u32 %v513, 23
        %v515 = vsub.s32 %v514, 127
        %v516 = vand.u32 2147483647, %v403
        %v517 = vand.u32 %v516, 8388607
        %v518 = vor.u32 %v517, 8388608
        %v519 = vsub.s32 0, %v518
        %v520 = vadd.s32 %v515, 1
        %vm521 = vcmp.gt.s32.totalorder %v520, 0
        %v522 = vsel %vm521, %v520, 0
        %v523 = vshrl.u32 %v522, 5
        %v524 = vand.u32 %v522, 31
        %v525 = vsub.s32 32, %v524
        %v526 = vshrl.u32 683565275, %v525
        %v527 = vshll.u32 683565275, %v524
        %v528 = vshrl.u32 2475754826, %v525
        %v529 = vor.u32 %v527, %v528
        %v530 = vshll.u32 2475754826, %v524
        %v531 = vshrl.u32 2131351028, %v525
        %v532 = vor.u32 %v530, %v531
        %v533 = vshll.u32 2131351028, %v524
        %v534 = vshrl.u32 2102212464, %v525
        %v535 = vor.u32 %v533, %v534
        %v536 = vshll.u32 2102212464, %v524
        %v537 = vshrl.u32 920167782, %v525
        %v538 = vor.u32 %v536, %v537
        %v539 = vshll.u32 920167782, %v524
        %v540 = vshrl.u32 1326507024, %v525
        %v541 = vor.u32 %v539, %v540
        %vm542 = vcmp.lt.s32.totalorder %v523, 1
        %vm543 = vcmp.lt.s32.totalorder %v523, 2
        %vm544 = vcmp.lt.s32.totalorder %v523, 3
        %vm545 = vcmp.lt.s32.totalorder %v523, 4
        %v546 = vsel %vm542, %v526, %v529
        %v547 = vsel %vm545, %v535, 2102212464
        %v548 = vsel %vm544, %v532, %v547
        %v549 = vsel %vm543, %v546, %v548
        %v550 = vsel %vm542, %v529, %v532
        %v551 = vsel %vm545, %v538, 920167782
        %v552 = vsel %vm544, %v535, %v551
        %v553 = vsel %vm543, %v550, %v552
        %v554 = vsel %vm542, %v532, %v535
        %v555 = vsel %vm545, %v541, 1326507024
        %v556 = vsel %vm544, %v538, %v555
        %v557 = vsel %vm543, %v554, %v556
        %v558 = vshll.u32 %v518, 8
        %v559 = vmul.u32.u64.compose %v558, %v557
        %v560 = vextract.low.u32 %v559
        %v561 = vextract.high.u32 %v559
        %v562 = vmul.u32.u64.compose %v558, %v553
        %v563 = vextract.low.u32 %v562
        %v564 = vextract.high.u32 %v562
        %v565 = vmul.u32 %v558, %v549
        %v566 = vadd.s32 %v561, %v563
        %vm567 = vc.u32 %v561, %v563
        %v568 = vadd.s32 %v564, 1
        %v569 = vsel %vm567, %v568, %v564
        %v570 = vadd.s32 %v565, %v569
        %v571 = vadd.s32 %v570, 536870912
        %v572 = vshrl.u32 %v571, 30
        %v573 = vshll.u32 %v572, 30
        %v574 = vsub.s32 %v570, %v573
        %vm575 = vcmp.lt.s32.totalorder %v574, 0
        %v576 = vsub.s32 0, %v574
        %v577 = vsel %vm575, %v576, %v574
        %v578 = vclz %v577
        %v579 = vsub.s32 %v578, 2
        %vm580 = vcmp.gt.s32.totalorder 0, %v579
        %v581 = vsel %vm580, 0, %v579
        %v582 = vsub.s32 32, %v581
        %v583 = vshll.u32 %v574, %v581
        %v584 = vshrl.u32 %v566, %v582
        %v585 = vor.u32 %v583, %v584
        %v586 = vsub.s32 4294967266, %v581
        %v587 = vadd.s32 %v586, 127
        %v588 = vshll.u32 %v587, 23
        %v589 = vor.u32 4788187, %v588
        %v590 = vand.u32 2147483647, %v589
        %v592 = vcvt.s32.f32 %v585
        %v593 = vmul.f32 %v592, %v590
        %v594 = vxor.u32 %v593, 2147483648
        %v595 = vsel %vm512, %v594, %v593
        %v596 = vsub.s32 4, %v572
        %v597 = vsel %vm512, %v596, %v572
        %v598 = vsel %vm511, %v403, %v595
        %v599 = vsel %vm511, 0, %v597
        %v600 = vcosq.f32.pop %v598
        %v601 = vsinq.f32.pop %v598
        %vm602 = vweird.f32 %v403
        %v603 = vadd.s32 %v599, 3
        %v604 = vand.u32 %v603, 3
        %vm605 = vcmp.lt.s32.totalorder %v604, 2
        %vm606 = vcmp.eq.s32.totalorder %v604, 0
        %v607 = vxor.u32 %v601, 2147483648
        %v608 = vsel %vm606, %v600, %v607
        %vm609 = vcmp.eq.s32.totalorder %v604, 2
        %v610 = vxor.u32 %v600, 2147483648
        %v611 = vsel %vm609, %v610, %v601
        %v612 = vsel %vm605, %v608, %v611
        %v613 = vsel %vm602, nan, %v612
        %v614 = vand.u32 2147483647, %v404
        %vm615 = vcmp.le.f32.partialorder %v614, 0.7853982
        %vm616 = vcmp.lt.s32.totalorder %v404, 0
        %v617 = vand.u32 %v404, 2139095040
        %v618 = vshrl.u32 %v617, 23
        %v619 = vsub.s32 %v618, 127
        %v620 = vand.u32 2147483647, %v404
        %v621 = vand.u32 %v620, 8388607
        %v622 = vor.u32 %v621, 8388608
        %v623 = vsub.s32 0, %v622
        %v624 = vadd.s32 %v619, 1
        %vm625 = vcmp.gt.s32.totalorder %v624, 0
        %v626 = vsel %vm625, %v624, 0
        %v627 = vshrl.u32 %v626, 5
        %v628 = vand.u32 %v626, 31
        %v629 = vsub.s32 32, %v628
        %v630 = vshrl.u32 683565275, %v629
        %v631 = vshll.u32 683565275, %v628
        %v632 = vshrl.u32 2475754826, %v629
        %v633 = vor.u32 %v631, %v632
        %v634 = vshll.u32 2475754826, %v628
        %v635 = vshrl.u32 2131351028, %v629
        %v636 = vor.u32 %v634, %v635
        %v637 = vshll.u32 2131351028, %v628
        %v638 = vshrl.u32 2102212464, %v629
        %v639 = vor.u32 %v637, %v638
        %v640 = vshll.u32 2102212464, %v628
        %v641 = vshrl.u32 920167782, %v629
        %v642 = vor.u32 %v640, %v641
        %v643 = vshll.u32 920167782, %v628
        %v644 = vshrl.u32 1326507024, %v629
        %v645 = vor.u32 %v643, %v644
        %vm646 = vcmp.lt.s32.totalorder %v627, 1
        %vm647 = vcmp.lt.s32.totalorder %v627, 2
        %vm648 = vcmp.lt.s32.totalorder %v627, 3
        %vm649 = vcmp.lt.s32.totalorder %v627, 4
        %v650 = vsel %vm646, %v630, %v633
        %v651 = vsel %vm649, %v639, 2102212464
        %v652 = vsel %vm648, %v636, %v651
        %v653 = vsel %vm647, %v650, %v652
        %v654 = vsel %vm646, %v633, %v636
        %v655 = vsel %vm649, %v642, 920167782
        %v656 = vsel %vm648, %v639, %v655
        %v657 = vsel %vm647, %v654, %v656
        %v658 = vsel %vm646, %v636, %v639
        %v659 = vsel %vm649, %v645, 1326507024
        %v660 = vsel %vm648, %v642, %v659
        %v661 = vsel %vm647, %v658, %v660
        %v662 = vshll.u32 %v622, 8
        %v663 = vmul.u32.u64.compose %v662, %v661
        %v664 = vextract.low.u32 %v663
        %v665 = vextract.high.u32 %v663
        %v666 = vmul.u32.u64.compose %v662, %v657
        %v667 = vextract.low.u32 %v666
        %v668 = vextract.high.u32 %v666
        %v669 = vmul.u32 %v662, %v653
        %v670 = vadd.s32 %v665, %v667
        %vm671 = vc.u32 %v665, %v667
        %v672 = vadd.s32 %v668, 1
        %v673 = vsel %vm671, %v672, %v668
        %v674 = vadd.s32 %v669, %v673
        %v675 = vadd.s32 %v674, 536870912
        %v676 = vshrl.u32 %v675, 30
        %v677 = vshll.u32 %v676, 30
        %v678 = vsub.s32 %v674, %v677
        %vm679 = vcmp.lt.s32.totalorder %v678, 0
        %v680 = vsub.s32 0, %v678
        %v681 = vsel %vm679, %v680, %v678
        %v682 = vclz %v681
        %v683 = vsub.s32 %v682, 2
        %vm684 = vcmp.gt.s32.totalorder 0, %v683
        %v685 = vsel %vm684, 0, %v683
        %v686 = vsub.s32 32, %v685
        %v687 = vshll.u32 %v678, %v685
        %v688 = vshrl.u32 %v670, %v686
        %v689 = vor.u32 %v687, %v688
        %v690 = vsub.s32 4294967266, %v685
        %v691 = vadd.s32 %v690, 127
        %v692 = vshll.u32 %v691, 23
        %v693 = vor.u32 4788187, %v692
        %v694 = vand.u32 2147483647, %v693
        %v696 = vcvt.s32.f32 %v689
        %v697 = vmul.f32 %v696, %v694
        %v698 = vxor.u32 %v697, 2147483648
        %v699 = vsel %vm616, %v698, %v697
        %v700 = vsub.s32 4, %v676
        %v701 = vsel %vm616, %v700, %v676
        %v702 = vsel %vm615, %v404, %v699
        %v703 = vsel %vm615, 0, %v701
        %v704 = vcosq.f32.pop %v702
        %v705 = vsinq.f32.pop %v702
        %vm706 = vweird.f32 %v404
        %v707 = vadd.s32 %v703, 3
        %v708 = vand.u32 %v707, 3
        %vm709 = vcmp.lt.s32.totalorder %v708, 2
        %vm710 = vcmp.eq.s32.totalorder %v708, 0
        %v711 = vxor.u32 %v705, 2147483648
        %v712 = vsel %vm710, %v704, %v711
        %vm713 = vcmp.eq.s32.totalorder %v708, 2
        %v714 = vxor.u32 %v704, 2147483648
        %v715 = vsel %vm713, %v714, %v705
        %v716 = vsel %vm709, %v712, %v715
        %v717 = vsel %vm706, nan, %v716
        %v718 = vand.u32 2147483647, %v405
        %vm719 = vcmp.le.f32.partialorder %v718, 0.7853982
        %vm720 = vcmp.lt.s32.totalorder %v405, 0
        %v721 = vand.u32 %v405, 2139095040
        %v722 = vshrl.u32 %v721, 23
        %v723 = vsub.s32 %v722, 127
        %v724 = vand.u32 2147483647, %v405
        %v725 = vand.u32 %v724, 8388607
        %v726 = vor.u32 %v725, 8388608
        %v727 = vsub.s32 0, %v726
        %v728 = vadd.s32 %v723, 1
        %vm729 = vcmp.gt.s32.totalorder %v728, 0
        %v730 = vsel %vm729, %v728, 0
        %v731 = vshrl.u32 %v730, 5
        %v732 = vand.u32 %v730, 31
        %v733 = vsub.s32 32, %v732
        %v734 = vshrl.u32 683565275, %v733
        %v735 = vshll.u32 683565275, %v732
        %v736 = vshrl.u32 2475754826, %v733
        %v737 = vor.u32 %v735, %v736
        %v738 = vshll.u32 2475754826, %v732
        %v739 = vshrl.u32 2131351028, %v733
        %v740 = vor.u32 %v738, %v739
        %v741 = vshll.u32 2131351028, %v732
        %v742 = vshrl.u32 2102212464, %v733
        %v743 = vor.u32 %v741, %v742
        %v744 = vshll.u32 2102212464, %v732
        %v745 = vshrl.u32 920167782, %v733
        %v746 = vor.u32 %v744, %v745
        %v747 = vshll.u32 920167782, %v732
        %v748 = vshrl.u32 1326507024, %v733
        %v749 = vor.u32 %v747, %v748
        %vm750 = vcmp.lt.s32.totalorder %v731, 1
        %vm751 = vcmp.lt.s32.totalorder %v731, 2
        %vm752 = vcmp.lt.s32.totalorder %v731, 3
        %vm753 = vcmp.lt.s32.totalorder %v731, 4
        %v754 = vsel %vm750, %v734, %v737
        %v755 = vsel %vm753, %v743, 2102212464
        %v756 = vsel %vm752, %v740, %v755
        %v757 = vsel %vm751, %v754, %v756
        %v758 = vsel %vm750, %v737, %v740
        %v759 = vsel %vm753, %v746, 920167782
        %v760 = vsel %vm752, %v743, %v759
        %v761 = vsel %vm751, %v758, %v760
        %v762 = vsel %vm750, %v740, %v743
        %v763 = vsel %vm753, %v749, 1326507024
        %v764 = vsel %vm752, %v746, %v763
        %v765 = vsel %vm751, %v762, %v764
        %v766 = vshll.u32 %v726, 8
        %v767 = vmul.u32.u64.compose %v766, %v765
        %v768 = vextract.low.u32 %v767
        %v769 = vextract.high.u32 %v767
        %v770 = vmul.u32.u64.compose %v766, %v761
        %v771 = vextract.low.u32 %v770
        %v772 = vextract.high.u32 %v770
        %v773 = vmul.u32 %v766, %v757
        %v774 = vadd.s32 %v769, %v771
        %vm775 = vc.u32 %v769, %v771
        %v776 = vadd.s32 %v772, 1
        %v777 = vsel %vm775, %v776, %v772
        %v778 = vadd.s32 %v773, %v777
        %v779 = vadd.s32 %v778, 536870912
        %v780 = vshrl.u32 %v779, 30
        %v781 = vshll.u32 %v780, 30
        %v782 = vsub.s32 %v778, %v781
        %vm783 = vcmp.lt.s32.totalorder %v782, 0
        %v784 = vsub.s32 0, %v782
        %v785 = vsel %vm783, %v784, %v782
        %v786 = vclz %v785
        %v787 = vsub.s32 %v786, 2
        %vm788 = vcmp.gt.s32.totalorder 0, %v787
        %v789 = vsel %vm788, 0, %v787
        %v790 = vsub.s32 32, %v789
        %v791 = vshll.u32 %v782, %v789
        %v792 = vshrl.u32 %v774, %v790
        %v793 = vor.u32 %v791, %v792
        %v794 = vsub.s32 4294967266, %v789
        %v795 = vadd.s32 %v794, 127
        %v796 = vshll.u32 %v795, 23
        %v797 = vor.u32 4788187, %v796
        %v798 = vand.u32 2147483647, %v797
        %v800 = vcvt.s32.f32 %v793
        %v801 = vmul.f32 %v800, %v798
        %v802 = vxor.u32 %v801, 2147483648
        %v803 = vsel %vm720, %v802, %v801
        %v804 = vsub.s32 4, %v780
        %v805 = vsel %vm720, %v804, %v780
        %v806 = vsel %vm719, %v405, %v803
        %v807 = vsel %vm719, 0, %v805
        %v808 = vcosq.f32.pop %v806
        %v809 = vsinq.f32.pop %v806
        %vm810 = vweird.f32 %v405
        %v811 = vadd.s32 %v807, 3
        %v812 = vand.u32 %v811, 3
        %vm813 = vcmp.lt.s32.totalorder %v812, 2
        %vm814 = vcmp.eq.s32.totalorder %v812, 0
        %v815 = vxor.u32 %v809, 2147483648
        %v816 = vsel %vm814, %v808, %v815
        %vm817 = vcmp.eq.s32.totalorder %v812, 2
        %v818 = vxor.u32 %v808, 2147483648
        %v819 = vsel %vm817, %v818, %v809
        %v820 = vsel %vm813, %v816, %v819
        %v821 = vsel %vm810, nan, %v820
        %v822 = vand.u32 2147483647, %v402
        %vm823 = vcmp.le.f32.partialorder %v822, 0.7853982
        %vm824 = vcmp.lt.s32.totalorder %v402, 0
        %v825 = vand.u32 %v402, 2139095040
        %v826 = vshrl.u32 %v825, 23
        %v827 = vsub.s32 %v826, 127
        %v828 = vand.u32 2147483647, %v402
        %v829 = vand.u32 %v828, 8388607
        %v830 = vor.u32 %v829, 8388608
        %v831 = vsub.s32 0, %v830
        %v832 = vadd.s32 %v827, 1
        %vm833 = vcmp.gt.s32.totalorder %v832, 0
        %v834 = vsel %vm833, %v832, 0
        %v835 = vshrl.u32 %v834, 5
        %v836 = vand.u32 %v834, 31
        %v837 = vsub.s32 32, %v836
        %v838 = vshrl.u32 683565275, %v837
        %v839 = vshll.u32 683565275, %v836
        %v840 = vshrl.u32 2475754826, %v837
        %v841 = vor.u32 %v839, %v840
        %v842 = vshll.u32 2475754826, %v836
        %v843 = vshrl.u32 2131351028, %v837
        %v844 = vor.u32 %v842, %v843
        %v845 = vshll.u32 2131351028, %v836
        %v846 = vshrl.u32 2102212464, %v837
        %v847 = vor.u32 %v845, %v846
        %v848 = vshll.u32 2102212464, %v836
        %v849 = vshrl.u32 920167782, %v837
        %v850 = vor.u32 %v848, %v849
        %v851 = vshll.u32 920167782, %v836
        %v852 = vshrl.u32 1326507024, %v837
        %v853 = vor.u32 %v851, %v852
        %vm854 = vcmp.lt.s32.totalorder %v835, 1
        %vm855 = vcmp.lt.s32.totalorder %v835, 2
        %vm856 = vcmp.lt.s32.totalorder %v835, 3
        %vm857 = vcmp.lt.s32.totalorder %v835, 4
        %v858 = vsel %vm854, %v838, %v841
        %v859 = vsel %vm857, %v847, 2102212464
        %v860 = vsel %vm856, %v844, %v859
        %v861 = vsel %vm855, %v858, %v860
        %v862 = vsel %vm854, %v841, %v844
        %v863 = vsel %vm857, %v850, 920167782
        %v864 = vsel %vm856, %v847, %v863
        %v865 = vsel %vm855, %v862, %v864
        %v866 = vsel %vm854, %v844, %v847
        %v867 = vsel %vm857, %v853, 1326507024
        %v868 = vsel %vm856, %v850, %v867
        %v869 = vsel %vm855, %v866, %v868
        %v870 = vshll.u32 %v830, 8
        %v871 = vmul.u32.u64.compose %v870, %v869
        %v872 = vextract.low.u32 %v871
        %v873 = vextract.high.u32 %v871
        %v874 = vmul.u32.u64.compose %v870, %v865
        %v875 = vextract.low.u32 %v874
        %v876 = vextract.high.u32 %v874
        %v877 = vmul.u32 %v870, %v861
        %v878 = vadd.s32 %v873, %v875
        %vm879 = vc.u32 %v873, %v875
        %v880 = vadd.s32 %v876, 1
        %v881 = vsel %vm879, %v880, %v876
        %v882 = vadd.s32 %v877, %v881
        %v883 = vadd.s32 %v882, 536870912
        %v884 = vshrl.u32 %v883, 30
        %v885 = vshll.u32 %v884, 30
        %v886 = vsub.s32 %v882, %v885
        %vm887 = vcmp.lt.s32.totalorder %v886, 0
        %v888 = vsub.s32 0, %v886
        %v889 = vsel %vm887, %v888, %v886
        %v890 = vclz %v889
        %v891 = vsub.s32 %v890, 2
        %vm892 = vcmp.gt.s32.totalorder 0, %v891
        %v893 = vsel %vm892, 0, %v891
        %v894 = vsub.s32 32, %v893
        %v895 = vshll.u32 %v886, %v893
        %v896 = vshrl.u32 %v878, %v894
        %v897 = vor.u32 %v895, %v896
        %v898 = vsub.s32 4294967266, %v893
        %v899 = vadd.s32 %v898, 127
        %v900 = vshll.u32 %v899, 23
        %v901 = vor.u32 4788187, %v900
        %v902 = vand.u32 2147483647, %v901
        %v904 = vcvt.s32.f32 %v897
        %v905 = vmul.f32 %v904, %v902
        %v906 = vxor.u32 %v905, 2147483648
        %v907 = vsel %vm824, %v906, %v905
        %v908 = vsub.s32 4, %v884
        %v909 = vsel %vm824, %v908, %v884
        %v910 = vsel %vm823, %v402, %v907
        %v911 = vsel %vm823, 0, %v909
        %v912 = vcosq.f32.pop %v910
        %v913 = vsinq.f32.pop %v910
        %vm914 = vweird.f32 %v402
        %v915 = vand.u32 %v911, 3
        %vm916 = vcmp.lt.s32.totalorder %v915, 2
        %vm917 = vcmp.eq.s32.totalorder %v915, 0
        %v918 = vxor.u32 %v913, 2147483648
        %v919 = vsel %vm917, %v912, %v918
        %vm920 = vcmp.eq.s32.totalorder %v915, 2
        %v921 = vxor.u32 %v912, 2147483648
        %v922 = vsel %vm920, %v921, %v913
        %v923 = vsel %vm916, %v919, %v922
        %v924 = vsel %vm914, nan, %v923
        %v925 = vand.u32 2147483647, %v403
        %vm926 = vcmp.le.f32.partialorder %v925, 0.7853982
        %vm927 = vcmp.lt.s32.totalorder %v403, 0
        %v928 = vand.u32 %v403, 2139095040
        %v929 = vshrl.u32 %v928, 23
        %v930 = vsub.s32 %v929, 127
        %v931 = vand.u32 2147483647, %v403
        %v932 = vand.u32 %v931, 8388607
        %v933 = vor.u32 %v932, 8388608
        %v934 = vsub.s32 0, %v933
        %v935 = vadd.s32 %v930, 1
        %vm936 = vcmp.gt.s32.totalorder %v935, 0
        %v937 = vsel %vm936, %v935, 0
        %v938 = vshrl.u32 %v937, 5
        %v939 = vand.u32 %v937, 31
        %v940 = vsub.s32 32, %v939
        %v941 = vshrl.u32 683565275, %v940
        %v942 = vshll.u32 683565275, %v939
        %v943 = vshrl.u32 2475754826, %v940
        %v944 = vor.u32 %v942, %v943
        %v945 = vshll.u32 2475754826, %v939
        %v946 = vshrl.u32 2131351028, %v940
        %v947 = vor.u32 %v945, %v946
        %v948 = vshll.u32 2131351028, %v939
        %v949 = vshrl.u32 2102212464, %v940
        %v950 = vor.u32 %v948, %v949
        %v951 = vshll.u32 2102212464, %v939
        %v952 = vshrl.u32 920167782, %v940
        %v953 = vor.u32 %v951, %v952
        %v954 = vshll.u32 920167782, %v939
        %v955 = vshrl.u32 1326507024, %v940
        %v956 = vor.u32 %v954, %v955
        %vm957 = vcmp.lt.s32.totalorder %v938, 1
        %vm958 = vcmp.lt.s32.totalorder %v938, 2
        %vm959 = vcmp.lt.s32.totalorder %v938, 3
        %vm960 = vcmp.lt.s32.totalorder %v938, 4
        %v961 = vsel %vm957, %v941, %v944
        %v962 = vsel %vm960, %v950, 2102212464
        %v963 = vsel %vm959, %v947, %v962
        %v964 = vsel %vm958, %v961, %v963
        %v965 = vsel %vm957, %v944, %v947
        %v966 = vsel %vm960, %v953, 920167782
        %v967 = vsel %vm959, %v950, %v966
        %v968 = vsel %vm958, %v965, %v967
        %v969 = vsel %vm957, %v947, %v950
        %v970 = vsel %vm960, %v956, 1326507024
        %v971 = vsel %vm959, %v953, %v970
        %v972 = vsel %vm958, %v969, %v971
        %v973 = vshll.u32 %v933, 8
        %v974 = vmul.u32.u64.compose %v973, %v972
        %v975 = vextract.low.u32 %v974
        %v976 = vextract.high.u32 %v974
        %v977 = vmul.u32.u64.compose %v973, %v968
        %v978 = vextract.low.u32 %v977
        %v979 = vextract.high.u32 %v977
        %v980 = vmul.u32 %v973, %v964
        %v981 = vadd.s32 %v976, %v978
        %vm982 = vc.u32 %v976, %v978
        %v983 = vadd.s32 %v979, 1
        %v984 = vsel %vm982, %v983, %v979
        %v985 = vadd.s32 %v980, %v984
        %v986 = vadd.s32 %v985, 536870912
        %v987 = vshrl.u32 %v986, 30
        %v988 = vshll.u32 %v987, 30
        %v989 = vsub.s32 %v985, %v988
        %vm990 = vcmp.lt.s32.totalorder %v989, 0
        %v991 = vsub.s32 0, %v989
        %v992 = vsel %vm990, %v991, %v989
        %v993 = vclz %v992
        %v994 = vsub.s32 %v993, 2
        %vm995 = vcmp.gt.s32.totalorder 0, %v994
        %v996 = vsel %vm995, 0, %v994
        %v997 = vsub.s32 32, %v996
        %v998 = vshll.u32 %v989, %v996
        %v999 = vshrl.u32 %v981, %v997
        %v1000 = vor.u32 %v998, %v999
        %v1001 = vsub.s32 4294967266, %v996
        %v1002 = vadd.s32 %v1001, 127
        %v1003 = vshll.u32 %v1002, 23
        %v1004 = vor.u32 4788187, %v1003
        %v1005 = vand.u32 2147483647, %v1004
        %v1007 = vcvt.s32.f32 %v1000
        %v1008 = vmul.f32 %v1007, %v1005
        %v1009 = vxor.u32 %v1008, 2147483648
        %v1010 = vsel %vm927, %v1009, %v1008
        %v1011 = vsub.s32 4, %v987
        %v1012 = vsel %vm927, %v1011, %v987
        %v1013 = vsel %vm926, %v403, %v1010
        %v1014 = vsel %vm926, 0, %v1012
        %v1015 = vcosq.f32.pop %v1013
        %v1016 = vsinq.f32.pop %v1013
        %vm1017 = vweird.f32 %v403
        %v1018 = vand.u32 %v1014, 3
        %vm1019 = vcmp.lt.s32.totalorder %v1018, 2
        %vm1020 = vcmp.eq.s32.totalorder %v1018, 0
        %v1021 = vxor.u32 %v1016, 2147483648
        %v1022 = vsel %vm1020, %v1015, %v1021
        %vm1023 = vcmp.eq.s32.totalorder %v1018, 2
        %v1024 = vxor.u32 %v1015, 2147483648
        %v1025 = vsel %vm1023, %v1024, %v1016
        %v1026 = vsel %vm1019, %v1022, %v1025
        %v1027 = vsel %vm1017, nan, %v1026
        %v1028 = vand.u32 2147483647, %v404
        %vm1029 = vcmp.le.f32.partialorder %v1028, 0.7853982
        %vm1030 = vcmp.lt.s32.totalorder %v404, 0
        %v1031 = vand.u32 %v404, 2139095040
        %v1032 = vshrl.u32 %v1031, 23
        %v1033 = vsub.s32 %v1032, 127
        %v1034 = vand.u32 2147483647, %v404
        %v1035 = vand.u32 %v1034, 8388607
        %v1036 = vor.u32 %v1035, 8388608
        %v1037 = vsub.s32 0, %v1036
        %v1038 = vadd.s32 %v1033, 1
        %vm1039 = vcmp.gt.s32.totalorder %v1038, 0
        %v1040 = vsel %vm1039, %v1038, 0
        %v1041 = vshrl.u32 %v1040, 5
        %v1042 = vand.u32 %v1040, 31
        %v1043 = vsub.s32 32, %v1042
        %v1044 = vshrl.u32 683565275, %v1043
        %v1045 = vshll.u32 683565275, %v1042
        %v1046 = vshrl.u32 2475754826, %v1043
        %v1047 = vor.u32 %v1045, %v1046
        %v1048 = vshll.u32 2475754826, %v1042
        %v1049 = vshrl.u32 2131351028, %v1043
        %v1050 = vor.u32 %v1048, %v1049
        %v1051 = vshll.u32 2131351028, %v1042
        %v1052 = vshrl.u32 2102212464, %v1043
        %v1053 = vor.u32 %v1051, %v1052
        %v1054 = vshll.u32 2102212464, %v1042
        %v1055 = vshrl.u32 920167782, %v1043
        %v1056 = vor.u32 %v1054, %v1055
        %v1057 = vshll.u32 920167782, %v1042
        %v1058 = vshrl.u32 1326507024, %v1043
        %v1059 = vor.u32 %v1057, %v1058
        %vm1060 = vcmp.lt.s32.totalorder %v1041, 1
        %vm1061 = vcmp.lt.s32.totalorder %v1041, 2
        %vm1062 = vcmp.lt.s32.totalorder %v1041, 3
        %vm1063 = vcmp.lt.s32.totalorder %v1041, 4
        %v1064 = vsel %vm1060, %v1044, %v1047
        %v1065 = vsel %vm1063, %v1053, 2102212464
        %v1066 = vsel %vm1062, %v1050, %v1065
        %v1067 = vsel %vm1061, %v1064, %v1066
        %v1068 = vsel %vm1060, %v1047, %v1050
        %v1069 = vsel %vm1063, %v1056, 920167782
        %v1070 = vsel %vm1062, %v1053, %v1069
        %v1071 = vsel %vm1061, %v1068, %v1070
        %v1072 = vsel %vm1060, %v1050, %v1053
        %v1073 = vsel %vm1063, %v1059, 1326507024
        %v1074 = vsel %vm1062, %v1056, %v1073
        %v1075 = vsel %vm1061, %v1072, %v1074
        %v1076 = vshll.u32 %v1036, 8
        %v1077 = vmul.u32.u64.compose %v1076, %v1075
        %v1078 = vextract.low.u32 %v1077
        %v1079 = vextract.high.u32 %v1077
        %v1080 = vmul.u32.u64.compose %v1076, %v1071
        %v1081 = vextract.low.u32 %v1080
        %v1082 = vextract.high.u32 %v1080
        %v1083 = vmul.u32 %v1076, %v1067
        %v1084 = vadd.s32 %v1079, %v1081
        %vm1085 = vc.u32 %v1079, %v1081
        %v1086 = vadd.s32 %v1082, 1
        %v1087 = vsel %vm1085, %v1086, %v1082
        %v1088 = vadd.s32 %v1083, %v1087
        %v1089 = vadd.s32 %v1088, 536870912
        %v1090 = vshrl.u32 %v1089, 30
        %v1091 = vshll.u32 %v1090, 30
        %v1092 = vsub.s32 %v1088, %v1091
        %vm1093 = vcmp.lt.s32.totalorder %v1092, 0
        %v1094 = vsub.s32 0, %v1092
        %v1095 = vsel %vm1093, %v1094, %v1092
        %v1096 = vclz %v1095
        %v1097 = vsub.s32 %v1096, 2
        %vm1098 = vcmp.gt.s32.totalorder 0, %v1097
        %v1099 = vsel %vm1098, 0, %v1097
        %v1100 = vsub.s32 32, %v1099
        %v1101 = vshll.u32 %v1092, %v1099
        %v1102 = vshrl.u32 %v1084, %v1100
        %v1103 = vor.u32 %v1101, %v1102
        %v1104 = vsub.s32 4294967266, %v1099
        %v1105 = vadd.s32 %v1104, 127
        %v1106 = vshll.u32 %v1105, 23
        %v1107 = vor.u32 4788187, %v1106
        %v1108 = vand.u32 2147483647, %v1107
        %v1110 = vcvt.s32.f32 %v1103
        %v1111 = vmul.f32 %v1110, %v1108
        %v1112 = vxor.u32 %v1111, 2147483648
        %v1113 = vsel %vm1030, %v1112, %v1111
        %v1114 = vsub.s32 4, %v1090
        %v1115 = vsel %vm1030, %v1114, %v1090
        %v1116 = vsel %vm1029, %v404, %v1113
        %v1117 = vsel %vm1029, 0, %v1115
        %v1118 = vcosq.f32.pop %v1116
        %v1119 = vsinq.f32.pop %v1116
        %vm1120 = vweird.f32 %v404
        %v1121 = vand.u32 %v1117, 3
        %vm1122 = vcmp.lt.s32.totalorder %v1121, 2
        %vm1123 = vcmp.eq.s32.totalorder %v1121, 0
        %v1124 = vxor.u32 %v1119, 2147483648
        %v1125 = vsel %vm1123, %v1118, %v1124
        %vm1126 = vcmp.eq.s32.totalorder %v1121, 2
        %v1127 = vxor.u32 %v1118, 2147483648
        %v1128 = vsel %vm1126, %v1127, %v1119
        %v1129 = vsel %vm1122, %v1125, %v1128
        %v1130 = vsel %vm1120, nan, %v1129
        %v1131 = vand.u32 2147483647, %v405
        %vm1132 = vcmp.le.f32.partialorder %v1131, 0.7853982
        %vm1133 = vcmp.lt.s32.totalorder %v405, 0
        %v1134 = vand.u32 %v405, 2139095040
        %v1135 = vshrl.u32 %v1134, 23
        %v1136 = vsub.s32 %v1135, 127
        %v1137 = vand.u32 2147483647, %v405
        %v1138 = vand.u32 %v1137, 8388607
        %v1139 = vor.u32 %v1138, 8388608
        %v1140 = vsub.s32 0, %v1139
        %v1141 = vadd.s32 %v1136, 1
        %vm1142 = vcmp.gt.s32.totalorder %v1141, 0
        %v1143 = vsel %vm1142, %v1141, 0
        %v1144 = vshrl.u32 %v1143, 5
        %v1145 = vand.u32 %v1143, 31
        %v1146 = vsub.s32 32, %v1145
        %v1147 = vshrl.u32 683565275, %v1146
        %v1148 = vshll.u32 683565275, %v1145
        %v1149 = vshrl.u32 2475754826, %v1146
        %v1150 = vor.u32 %v1148, %v1149
        %v1151 = vshll.u32 2475754826, %v1145
        %v1152 = vshrl.u32 2131351028, %v1146
        %v1153 = vor.u32 %v1151, %v1152
        %v1154 = vshll.u32 2131351028, %v1145
        %v1155 = vshrl.u32 2102212464, %v1146
        %v1156 = vor.u32 %v1154, %v1155
        %v1157 = vshll.u32 2102212464, %v1145
        %v1158 = vshrl.u32 920167782, %v1146
        %v1159 = vor.u32 %v1157, %v1158
        %v1160 = vshll.u32 920167782, %v1145
        %v1161 = vshrl.u32 1326507024, %v1146
        %v1162 = vor.u32 %v1160, %v1161
        %vm1163 = vcmp.lt.s32.totalorder %v1144, 1
        %vm1164 = vcmp.lt.s32.totalorder %v1144, 2
        %vm1165 = vcmp.lt.s32.totalorder %v1144, 3
        %vm1166 = vcmp.lt.s32.totalorder %v1144, 4
        %v1167 = vsel %vm1163, %v1147, %v1150
        %v1168 = vsel %vm1166, %v1156, 2102212464
        %v1169 = vsel %vm1165, %v1153, %v1168
        %v1170 = vsel %vm1164, %v1167, %v1169
        %v1171 = vsel %vm1163, %v1150, %v1153
        %v1172 = vsel %vm1166, %v1159, 920167782
        %v1173 = vsel %vm1165, %v1156, %v1172
        %v1174 = vsel %vm1164, %v1171, %v1173
        %v1175 = vsel %vm1163, %v1153, %v1156
        %v1176 = vsel %vm1166, %v1162, 1326507024
        %v1177 = vsel %vm1165, %v1159, %v1176
        %v1178 = vsel %vm1164, %v1175, %v1177
        %v1179 = vshll.u32 %v1139, 8
        %v1180 = vmul.u32.u64.compose %v1179, %v1178
        %v1181 = vextract.low.u32 %v1180
        %v1182 = vextract.high.u32 %v1180
        %v1183 = vmul.u32.u64.compose %v1179, %v1174
        %v1184 = vextract.low.u32 %v1183
        %v1185 = vextract.high.u32 %v1183
        %v1186 = vmul.u32 %v1179, %v1170
        %v1187 = vadd.s32 %v1182, %v1184
        %vm1188 = vc.u32 %v1182, %v1184
        %v1189 = vadd.s32 %v1185, 1
        %v1190 = vsel %vm1188, %v1189, %v1185
        %v1191 = vadd.s32 %v1186, %v1190
        %v1192 = vadd.s32 %v1191, 536870912
        %v1193 = vshrl.u32 %v1192, 30
        %v1194 = vshll.u32 %v1193, 30
        %v1195 = vsub.s32 %v1191, %v1194
        %vm1196 = vcmp.lt.s32.totalorder %v1195, 0
        %v1197 = vsub.s32 0, %v1195
        %v1198 = vsel %vm1196, %v1197, %v1195
        %v1199 = vclz %v1198
        %v1200 = vsub.s32 %v1199, 2
        %vm1201 = vcmp.gt.s32.totalorder 0, %v1200
        %v1202 = vsel %vm1201, 0, %v1200
        %v1203 = vsub.s32 32, %v1202
        %v1204 = vshll.u32 %v1195, %v1202
        %v1205 = vshrl.u32 %v1187, %v1203
        %v1206 = vor.u32 %v1204, %v1205
        %v1207 = vsub.s32 4294967266, %v1202
        %v1208 = vadd.s32 %v1207, 127
        %v1209 = vshll.u32 %v1208, 23
        %v1210 = vor.u32 4788187, %v1209
        %v1211 = vand.u32 2147483647, %v1210
        %v1213 = vcvt.s32.f32 %v1206
        %v1214 = vmul.f32 %v1213, %v1211
        %v1215 = vxor.u32 %v1214, 2147483648
        %v1216 = vsel %vm1133, %v1215, %v1214
        %v1217 = vsub.s32 4, %v1193
        %v1218 = vsel %vm1133, %v1217, %v1193
        %v1219 = vsel %vm1132, %v405, %v1216
        %v1220 = vsel %vm1132, 0, %v1218
        %v1221 = vcosq.f32.pop %v1219
        %v1222 = vsinq.f32.pop %v1219
        %vm1223 = vweird.f32 %v405
        %v1224 = vand.u32 %v1220, 3
        %vm1225 = vcmp.lt.s32.totalorder %v1224, 2
        %vm1226 = vcmp.eq.s32.totalorder %v1224, 0
        %v1227 = vxor.u32 %v1222, 2147483648
        %v1228 = vsel %vm1226, %v1221, %v1227
        %vm1229 = vcmp.eq.s32.totalorder %v1224, 2
        %v1230 = vxor.u32 %v1221, 2147483648
        %v1231 = vsel %vm1229, %v1230, %v1222
        %v1232 = vsel %vm1225, %v1228, %v1231
        %v1233 = vsel %vm1223, nan, %v1232
        %v1234 = vld [vmem:[%s370] sm:$0xff]
        %v1235 = vld [vmem:[%s370 + $0x8] sm:$0xff]
        %v1236 = vld [vmem:[%s370 + $0x10] sm:$0xff]
        %v1237 = vld [vmem:[%s370 + $0x18] sm:$0xff]
        %v1238 = vld [vmem:[%s3] sm:$0xff]
        %v1239 = vld [vmem:[%s3 + $0x8] sm:$0xff]
        %v1240 = vld [vmem:[%s3 + $0x10] sm:$0xff]
        %v1241 = vld [vmem:[%s3 + $0x18] sm:$0xff]
        %v1242 = vld [vmem:[%s4] sm:$0xff]
        %v1243 = vld [vmem:[%s4 + $0x8] sm:$0xff]
        %v1244 = vld [vmem:[%s4 + $0x10] sm:$0xff]
        %v1245 = vld [vmem:[%s4 + $0x18] sm:$0xff]
        %vm1246 = vcmask 261120
        %v1248 = vsel %vm1246, %v1242, 0
        %v1251 = vsel %vm1246, %v1243, 0
        %v1254 = vsel %vm1246, %v1244, 0
        %v1257 = vsel %vm1246, %v1245, 0
        %1259 = vmatprep.subr.mxu0 0.0
        %1260 = vmatpush1.msra.mxu0 0.0
        %1261 = vmatprep.subr.mxu0 0.0
        %1262 = vmatpush1.msra.mxu0 0.0
        %1263 = vmatprep.subr.mxu0 0.0
        %1264 = vmatpush1.msra.mxu0 0.0
        %1265 = vmatprep.subr.mxu0 0.0
        %1266 = vmatpush1.msra.mxu0 0.0
        %1267 = vmatprep.subr.mxu0 0.0
        %1268 = vmatpush1.msra.mxu0 0.0
        %1269 = vmatprep.subr.mxu0 0.0
        %1270 = vmatpush1.msra.mxu0 0.0
        %1271 = vmatprep.subr.mxu0 0.0
        %1272 = vmatpush1.msra.mxu0 0.0
        %1273 = vmatprep.subr.mxu0 0.0
        %1274 = vmatpush1.msra.mxu0 0.0
        %1275 = vmatprep.subr.mxu0 0.0
        %1276 = vmatpush1.msra.mxu0 0.0
        %1277 = vmatprep.subr.mxu0 0.0
        %1278 = vmatpush1.msra.mxu0 0.0
        %1279 = vmatprep.subr.mxu0 0.0
        %1280 = vmatpush1.msra.mxu0 0.0
        %1281 = vmatprep.subr.mxu0 0.0
        %1282 = vmatpush1.msra.mxu0 0.0
        %1283 = vmatprep.subr.mxu0 0.0
        %1284 = vmatpush1.msra.mxu0 %v1233
        %1285 = vmatprep.subr.mxu0 0.0
        %1286 = vmatpush1.msra.mxu0 %v1130
        %1287 = vmatprep.subr.mxu0 0.0
        %1288 = vmatpush1.msra.mxu0 %v1027
        %1289 = vmatprep.subr.mxu0 0.0
        %1290 = vmatpush1.msra.mxu0 %v924
        %1291 = vmatprep.subr.mxu0 0.0
        %1292 = vmatpush2.msra.mxu0 0.0
        %1293 = vmatprep.subr.mxu0 0.0
        %1294 = vmatpush2.msra.mxu0 0.0
        %1295 = vmatprep.subr.mxu0 0.0
        %1296 = vmatpush2.msra.mxu0 0.0
        %1297 = vmatprep.subr.mxu0 0.0
        %1298 = vmatpush2.msra.mxu0 0.0
        %1299 = vmatprep.subr.mxu0 0.0
        %1300 = vmatpush2.msra.mxu0 0.0
        %1301 = vmatprep.subr.mxu0 0.0
        %1302 = vmatpush2.msra.mxu0 0.0
        %1303 = vmatprep.subr.mxu0 0.0
        %1304 = vmatpush2.msra.mxu0 0.0
        %1305 = vmatprep.subr.mxu0 0.0
        %1306 = vmatpush2.msra.mxu0 0.0
        %1307 = vmatprep.subr.mxu0 0.0
        %1308 = vmatpush2.msra.mxu0 0.0
        %1309 = vmatprep.subr.mxu0 0.0
        %1310 = vmatpush2.msra.mxu0 0.0
        %1311 = vmatprep.subr.mxu0 0.0
        %1312 = vmatpush2.msra.mxu0 0.0
        %1313 = vmatprep.subr.mxu0 0.0
        %1314 = vmatpush2.msra.mxu0 0.0
        %1315 = vmatprep.subr.mxu0 0.0
        %1316 = vmatpush2.msra.mxu0 0.0
        %1317 = vmatprep.subr.mxu0 0.0
        %1318 = vmatpush2.msra.mxu0 0.0
        %1319 = vmatprep.subr.mxu0 0.0
        %1320 = vmatpush2.msra.mxu0 0.0
        %1321 = vmatprep.subr.mxu0 0.0
        %1322 = vmatpush2.msra.mxu0 0.0
        %1323 = vmatprep.mubr.f32.mxu0 0.0
        %1324 = vmatmul.mubr.f32.gmra.mxu0 %v1248
        %v1325 = vpop.f32.mrf.mxu0
        %v1326 = vadd.f32 0.0, %v1325
        %v1327 = vpop.f32.mrf.mxu0
        %1328 = vmatprep.mubr.f32.mxu0 0.0
        %1329 = vmatmul.mubr.f32.gmra.mxu0 %v1251
        %v1330 = vpop.f32.mrf.mxu0
        %v1331 = vadd.f32 0.0, %v1330
        %v1332 = vpop.f32.mrf.mxu0
        %1333 = vmatprep.mubr.f32.mxu0 0.0
        %1334 = vmatmul.mubr.f32.gmra.mxu0 %v1254
        %v1335 = vpop.f32.mrf.mxu0
        %v1336 = vadd.f32 0.0, %v1335
        %v1337 = vpop.f32.mrf.mxu0
        %1338 = vmatprep.mubr.f32.mxu0 0.0
        %1339 = vmatmul.mubr.f32.gmra.mxu0 %v1257
        %v1340 = vpop.f32.mrf.mxu0
        %v1341 = vadd.f32 0.0, %v1340
        %v1342 = vpop.f32.mrf.mxu0
        %1343 = vdwg.mxu0
        %v1345 = vsel %vm1246, %v1238, 0
        %v1348 = vsel %vm1246, %v1239, 0
        %v1351 = vsel %vm1246, %v1240, 0
        %v1354 = vsel %vm1246, %v1241, 0
        %1356 = vmatprep.subr.mxu0 0.0
        %1357 = vmatpush1.msra.mxu0 0.0
        %1358 = vmatprep.subr.mxu0 0.0
        %1359 = vmatpush1.msra.mxu0 0.0
        %1360 = vmatprep.subr.mxu0 0.0
        %1361 = vmatpush1.msra.mxu0 0.0
        %1362 = vmatprep.subr.mxu0 0.0
        %1363 = vmatpush1.msra.mxu0 0.0
        %1364 = vmatprep.subr.mxu0 0.0
        %1365 = vmatpush1.msra.mxu0 0.0
        %1366 = vmatprep.subr.mxu0 0.0
        %1367 = vmatpush1.msra.mxu0 0.0
        %1368 = vmatprep.subr.mxu0 0.0
        %1369 = vmatpush1.msra.mxu0 0.0
        %1370 = vmatprep.subr.mxu0 0.0
        %1371 = vmatpush1.msra.mxu0 0.0
        %1372 = vmatprep.subr.mxu0 0.0
        %1373 = vmatpush1.msra.mxu0 0.0
        %1374 = vmatprep.subr.mxu0 0.0
        %1375 = vmatpush1.msra.mxu0 0.0
        %1376 = vmatprep.subr.mxu0 0.0
        %1377 = vmatpush1.msra.mxu0 0.0
        %1378 = vmatprep.subr.mxu0 0.0
        %1379 = vmatpush1.msra.mxu0 0.0
        %1380 = vmatprep.subr.mxu0 0.0
        %1381 = vmatpush1.msra.mxu0 %v821
        %1382 = vmatprep.subr.mxu0 0.0
        %1383 = vmatpush1.msra.mxu0 %v717
        %1384 = vmatprep.subr.mxu0 0.0
        %1385 = vmatpush1.msra.mxu0 %v613
        %1386 = vmatprep.subr.mxu0 0.0
        %1387 = vmatpush1.msra.mxu0 %v509
        %1388 = vmatprep.subr.mxu0 0.0
        %1389 = vmatpush2.msra.mxu0 0.0
        %1390 = vmatprep.subr.mxu0 0.0
        %1391 = vmatpush2.msra.mxu0 0.0
        %1392 = vmatprep.subr.mxu0 0.0
        %1393 = vmatpush2.msra.mxu0 0.0
        %1394 = vmatprep.subr.mxu0 0.0
        %1395 = vmatpush2.msra.mxu0 0.0
        %1396 = vmatprep.subr.mxu0 0.0
        %1397 = vmatpush2.msra.mxu0 0.0
        %1398 = vmatprep.subr.mxu0 0.0
        %1399 = vmatpush2.msra.mxu0 0.0
        %1400 = vmatprep.subr.mxu0 0.0
        %1401 = vmatpush2.msra.mxu0 0.0
        %1402 = vmatprep.subr.mxu0 0.0
        %1403 = vmatpush2.msra.mxu0 0.0
        %1404 = vmatprep.subr.mxu0 0.0
        %1405 = vmatpush2.msra.mxu0 0.0
        %1406 = vmatprep.subr.mxu0 0.0
        %1407 = vmatpush2.msra.mxu0 0.0
        %1408 = vmatprep.subr.mxu0 0.0
        %1409 = vmatpush2.msra.mxu0 0.0
        %1410 = vmatprep.subr.mxu0 0.0
        %1411 = vmatpush2.msra.mxu0 0.0
        %1412 = vmatprep.subr.mxu0 0.0
        %1413 = vmatpush2.msra.mxu0 0.0
        %1414 = vmatprep.subr.mxu0 0.0
        %1415 = vmatpush2.msra.mxu0 0.0
        %1416 = vmatprep.subr.mxu0 0.0
        %1417 = vmatpush2.msra.mxu0 0.0
        %1418 = vmatprep.subr.mxu0 0.0
        %1419 = vmatpush2.msra.mxu0 0.0
        %1420 = vmatprep.mubr.f32.mxu0 0.0
        %1421 = vmatmul.mubr.f32.gmra.mxu0 %v1345
        %v1422 = vpop.f32.mrf.mxu0
        %v1423 = vadd.f32 %v1326, %v1422
        %v1424 = vpop.f32.mrf.mxu0
        %1425 = vmatprep.mubr.f32.mxu0 0.0
        %1426 = vmatmul.mubr.f32.gmra.mxu0 %v1348
        %v1427 = vpop.f32.mrf.mxu0
        %v1428 = vadd.f32 %v1331, %v1427
        %v1429 = vpop.f32.mrf.mxu0
        %1430 = vmatprep.mubr.f32.mxu0 0.0
        %1431 = vmatmul.mubr.f32.gmra.mxu0 %v1351
        %v1432 = vpop.f32.mrf.mxu0
        %v1433 = vadd.f32 %v1336, %v1432
        %v1434 = vpop.f32.mrf.mxu0
        %1435 = vmatprep.mubr.f32.mxu0 0.0
        %1436 = vmatmul.mubr.f32.gmra.mxu0 %v1354
        %v1437 = vpop.f32.mrf.mxu0
        %v1438 = vadd.f32 %v1341, %v1437
        %v1439 = vpop.f32.mrf.mxu0
        %1440 = vdwg.mxu0
        %1442 = vset.pattern.permute.xlu0 0
        %1443 = vperm.xlu0 %1442, %v1234
        %v1444 = vpop.permute.xlu0 %1443
        %1447 = vset.pattern.permute.xlu0 0
        %1448 = vperm.xlu0 %1447, %v1235
        %v1449 = vpop.permute.xlu0 %1448
        %1452 = vset.pattern.permute.xlu0 0
        %1453 = vperm.xlu0 %1452, %v1236
        %v1454 = vpop.permute.xlu0 %1453
        %1457 = vset.pattern.permute.xlu0 0
        %1458 = vperm.xlu0 %1457, %v1237
        %v1459 = vpop.permute.xlu0 %1458
        %v1461 = vadd.f32 %v1423, %v1444
        %v1462 = vadd.f32 %v1428, %v1449
        %v1463 = vadd.f32 %v1433, %v1454
        %v1464 = vadd.f32 %v1438, %v1459
        %vm1465 = vcmp.gt.f32.partialorder %v1461, 0.0
        %vm1466 = vcmp.gt.f32.partialorder %v1462, 0.0
        %vm1467 = vcmp.gt.f32.partialorder %v1463, 0.0
        %vm1468 = vcmp.gt.f32.partialorder %v1464, 0.0
        %v1469 = vmul.f32 %v1461, 0.2
        %v1470 = vmul.f32 %v1462, 0.2
        %v1471 = vmul.f32 %v1463, 0.2
        %v1472 = vmul.f32 %v1464, 0.2
        %v1473 = vsel %vm1465, %v1461, %v1469
        %v1474 = vsel %vm1466, %v1462, %v1470
        %v1475 = vsel %vm1467, %v1463, %v1471
        %v1476 = vsel %vm1468, %v1464, %v1472
        %v1477 = vld [vmem:[%s5] sm:$0xff]
        %v1478 = vld [vmem:[%s5 + $0x8] sm:$0xff]
        %v1479 = vld [vmem:[%s5 + $0x10] sm:$0xff]
        %v1480 = vld [vmem:[%s5 + $0x18] sm:$0xff]
        %v1481 = vld [vmem:[%s6] sm:$0xff]
        %v1482 = vld [vmem:[%s6 + $0x8] sm:$0xff]
        %v1483 = vld [vmem:[%s6 + $0x10] sm:$0xff]
        %v1484 = vld [vmem:[%s6 + $0x18] sm:$0xff]
        %1486 = vset.pattern.permute.xlu0 0
        %1487 = vperm.xlu0 %1486, %v1481
        %v1488 = vpop.permute.xlu0 %1487
        %1491 = vset.pattern.permute.xlu0 0
        %1492 = vperm.xlu0 %1491, %v1482
        %v1493 = vpop.permute.xlu0 %1492
        %1496 = vset.pattern.permute.xlu0 0
        %1497 = vperm.xlu0 %1496, %v1483
        %v1498 = vpop.permute.xlu0 %1497
        %1501 = vset.pattern.permute.xlu0 0
        %1502 = vperm.xlu0 %1501, %v1484
        %v1503 = vpop.permute.xlu0 %1502
        %v1506 = vsel %vm1246, %v1477, 0
        %v1509 = vsel %vm1246, %v1478, 0
        %v1512 = vsel %vm1246, %v1479, 0
        %v1515 = vsel %vm1246, %v1480, 0
        %1517 = vmatprep.subr.mxu0 0.0
        %1518 = vmatpush1.msra.mxu0 0.0
        %1519 = vmatprep.subr.mxu0 0.0
        %1520 = vmatpush1.msra.mxu0 0.0
        %1521 = vmatprep.subr.mxu0 0.0
        %1522 = vmatpush1.msra.mxu0 0.0
        %1523 = vmatprep.subr.mxu0 0.0
        %1524 = vmatpush1.msra.mxu0 0.0
        %1525 = vmatprep.subr.mxu0 0.0
        %1526 = vmatpush1.msra.mxu0 0.0
        %1527 = vmatprep.subr.mxu0 0.0
        %1528 = vmatpush1.msra.mxu0 0.0
        %1529 = vmatprep.subr.mxu0 0.0
        %1530 = vmatpush1.msra.mxu0 0.0
        %1531 = vmatprep.subr.mxu0 0.0
        %1532 = vmatpush1.msra.mxu0 0.0
        %1533 = vmatprep.subr.mxu0 0.0
        %1534 = vmatpush1.msra.mxu0 0.0
        %1535 = vmatprep.subr.mxu0 0.0
        %1536 = vmatpush1.msra.mxu0 0.0
        %1537 = vmatprep.subr.mxu0 0.0
        %1538 = vmatpush1.msra.mxu0 0.0
        %1539 = vmatprep.subr.mxu0 0.0
        %1540 = vmatpush1.msra.mxu0 0.0
        %1541 = vmatprep.subr.mxu0 0.0
        %1542 = vmatpush1.msra.mxu0 %v1476
        %1543 = vmatprep.subr.mxu0 0.0
        %1544 = vmatpush1.msra.mxu0 %v1475
        %1545 = vmatprep.subr.mxu0 0.0
        %1546 = vmatpush1.msra.mxu0 %v1474
        %1547 = vmatprep.subr.mxu0 0.0
        %1548 = vmatpush1.msra.mxu0 %v1473
        %1549 = vmatprep.subr.mxu0 0.0
        %1550 = vmatpush2.msra.mxu0 0.0
        %1551 = vmatprep.subr.mxu0 0.0
        %1552 = vmatpush2.msra.mxu0 0.0
        %1553 = vmatprep.subr.mxu0 0.0
        %1554 = vmatpush2.msra.mxu0 0.0
        %1555 = vmatprep.subr.mxu0 0.0
        %1556 = vmatpush2.msra.mxu0 0.0
        %1557 = vmatprep.subr.mxu0 0.0
        %1558 = vmatpush2.msra.mxu0 0.0
        %1559 = vmatprep.subr.mxu0 0.0
        %1560 = vmatpush2.msra.mxu0 0.0
        %1561 = vmatprep.subr.mxu0 0.0
        %1562 = vmatpush2.msra.mxu0 0.0
        %1563 = vmatprep.subr.mxu0 0.0
        %1564 = vmatpush2.msra.mxu0 0.0
        %1565 = vmatprep.subr.mxu0 0.0
        %1566 = vmatpush2.msra.mxu0 0.0
        %1567 = vmatprep.subr.mxu0 0.0
        %1568 = vmatpush2.msra.mxu0 0.0
        %1569 = vmatprep.subr.mxu0 0.0
        %1570 = vmatpush2.msra.mxu0 0.0
        %1571 = vmatprep.subr.mxu0 0.0
        %1572 = vmatpush2.msra.mxu0 0.0
        %1573 = vmatprep.subr.mxu0 0.0
        %1574 = vmatpush2.msra.mxu0 0.0
        %1575 = vmatprep.subr.mxu0 0.0
        %1576 = vmatpush2.msra.mxu0 0.0
        %1577 = vmatprep.subr.mxu0 0.0
        %1578 = vmatpush2.msra.mxu0 0.0
        %1579 = vmatprep.subr.mxu0 0.0
        %1580 = vmatpush2.msra.mxu0 0.0
        %1581 = vmatprep.mubr.f32.mxu0 0.0
        %1582 = vmatmul.mubr.f32.gmra.mxu0 %v1506
        %v1583 = vpop.f32.mrf.mxu0
        %v1584 = vadd.f32 %v1488, %v1583
        %v1585 = vpop.f32.mrf.mxu0
        %1586 = vmatprep.mubr.f32.mxu0 0.0
        %1587 = vmatmul.mubr.f32.gmra.mxu0 %v1509
        %v1588 = vpop.f32.mrf.mxu0
        %v1589 = vadd.f32 %v1493, %v1588
        %v1590 = vpop.f32.mrf.mxu0
        %1591 = vmatprep.mubr.f32.mxu0 0.0
        %1592 = vmatmul.mubr.f32.gmra.mxu0 %v1512
        %v1593 = vpop.f32.mrf.mxu0
        %v1594 = vadd.f32 %v1498, %v1593
        %v1595 = vpop.f32.mrf.mxu0
        %1596 = vmatprep.mubr.f32.mxu0 0.0
        %1597 = vmatmul.mubr.f32.gmra.mxu0 %v1515
        %v1598 = vpop.f32.mrf.mxu0
        %v1599 = vadd.f32 %v1503, %v1598
        %v1600 = vpop.f32.mrf.mxu0
        %1601 = vdwg.mxu0
        %vm1602 = vcmp.gt.f32.partialorder %v1584, 0.0
        %vm1603 = vcmp.gt.f32.partialorder %v1589, 0.0
        %vm1604 = vcmp.gt.f32.partialorder %v1594, 0.0
        %vm1605 = vcmp.gt.f32.partialorder %v1599, 0.0
        %v1606 = vmul.f32 %v1584, 0.2
        %v1607 = vmul.f32 %v1589, 0.2
        %v1608 = vmul.f32 %v1594, 0.2
        %v1609 = vmul.f32 %v1599, 0.2
        %v1610 = vsel %vm1602, %v1584, %v1606
        %v1611 = vsel %vm1603, %v1589, %v1607
        %v1612 = vsel %vm1604, %v1594, %v1608
        %v1613 = vsel %vm1605, %v1599, %v1609
        %v1614 = vld [vmem:[%s7] sm:$0x1]
        %v1615 = vld [vmem:[#allocation2] sm:$0x1]
        %1617 = vset.pattern.permute.xlu0 0
        %1618 = vperm.xlu0 %1617, %v1615
        %v1619 = vpop.permute.xlu0 %1618
        %v1621 = vlaneseq
        %v1622 = vshrl.u32 %v1621, 7
        %v1623 = vsub.s32 0, %v1622
        %v1624 = vrot.slane %v1619, %v1623
        %v1626 = vsel %vm1246, %v1614, 0
        %1628 = vmatprep.subr.mxu0 0.0
        %1629 = vmatpush1.msra.mxu0 0.0
        %1630 = vmatprep.subr.mxu0 0.0
        %1631 = vmatpush1.msra.mxu0 0.0
        %1632 = vmatprep.subr.mxu0 0.0
        %1633 = vmatpush1.msra.mxu0 0.0
        %1634 = vmatprep.subr.mxu0 0.0
        %1635 = vmatpush1.msra.mxu0 0.0
        %1636 = vmatprep.subr.mxu0 0.0
        %1637 = vmatpush1.msra.mxu0 0.0
        %1638 = vmatprep.subr.mxu0 0.0
        %1639 = vmatpush1.msra.mxu0 0.0
        %1640 = vmatprep.subr.mxu0 0.0
        %1641 = vmatpush1.msra.mxu0 0.0
        %1642 = vmatprep.subr.mxu0 0.0
        %1643 = vmatpush1.msra.mxu0 0.0
        %1644 = vmatprep.subr.mxu0 0.0
        %1645 = vmatpush1.msra.mxu0 0.0
        %1646 = vmatprep.subr.mxu0 0.0
        %1647 = vmatpush1.msra.mxu0 0.0
        %1648 = vmatprep.subr.mxu0 0.0
        %1649 = vmatpush1.msra.mxu0 0.0
        %1650 = vmatprep.subr.mxu0 0.0
        %1651 = vmatpush1.msra.mxu0 0.0
        %1652 = vmatprep.subr.mxu0 0.0
        %1653 = vmatpush1.msra.mxu0 %v1613
        %1654 = vmatprep.subr.mxu0 0.0
        %1655 = vmatpush1.msra.mxu0 %v1612
        %1656 = vmatprep.subr.mxu0 0.0
        %1657 = vmatpush1.msra.mxu0 %v1611
        %1658 = vmatprep.subr.mxu0 0.0
        %1659 = vmatpush1.msra.mxu0 %v1610
        %1660 = vmatprep.subr.mxu0 0.0
        %1661 = vmatpush2.msra.mxu0 0.0
        %1662 = vmatprep.subr.mxu0 0.0
        %1663 = vmatpush2.msra.mxu0 0.0
        %1664 = vmatprep.subr.mxu0 0.0
        %1665 = vmatpush2.msra.mxu0 0.0
        %1666 = vmatprep.subr.mxu0 0.0
        %1667 = vmatpush2.msra.mxu0 0.0
        %1668 = vmatprep.subr.mxu0 0.0
        %1669 = vmatpush2.msra.mxu0 0.0
        %1670 = vmatprep.subr.mxu0 0.0
        %1671 = vmatpush2.msra.mxu0 0.0
        %1672 = vmatprep.subr.mxu0 0.0
        %1673 = vmatpush2.msra.mxu0 0.0
        %1674 = vmatprep.subr.mxu0 0.0
        %1675 = vmatpush2.msra.mxu0 0.0
        %1676 = vmatprep.subr.mxu0 0.0
        %1677 = vmatpush2.msra.mxu0 0.0
        %1678 = vmatprep.subr.mxu0 0.0
        %1679 = vmatpush2.msra.mxu0 0.0
        %1680 = vmatprep.subr.mxu0 0.0
        %1681 = vmatpush2.msra.mxu0 0.0
        %1682 = vmatprep.subr.mxu0 0.0
        %1683 = vmatpush2.msra.mxu0 0.0
        %1684 = vmatprep.subr.mxu0 0.0
        %1685 = vmatpush2.msra.mxu0 0.0
        %1686 = vmatprep.subr.mxu0 0.0
        %1687 = vmatpush2.msra.mxu0 0.0
        %1688 = vmatprep.subr.mxu0 0.0
        %1689 = vmatpush2.msra.mxu0 0.0
        %1690 = vmatprep.subr.mxu0 0.0
        %1691 = vmatpush2.msra.mxu0 0.0
        %1692 = vmatprep.mubr.f32.mxu0 0.0
        %1693 = vmatmul.mubr.f32.gmra.mxu0 %v1626
        %v1694 = vpop.f32.mrf.mxu0
        %v1695 = vadd.f32 %v1624, %v1694
        %v1696 = vpop.f32.mrf.mxu0
        %1697 = vdwg.mxu0
        %1698 = vst [vmem:[%s359] sm:$0x1] %v1695
        %s1699 = sand.u32 %s248, 1
        %s1700 = scalar_lea.sflag [#allocation4], %s1699
        %s1701 = sand.u32 %s248, 1
        %s1702 = scalar_lea.vmem [#allocation3], %s1701
        // Predicated region
        $region57: #{tpu_custom_call.1} parent=55 // pred_check
          %p1703 = pneg %p258
        $region58: #{tpu_custom_call.1} parent=55 // pred_check_branch
          %1705 = sbr.rel (%p1703) target = $region60
        $region59: #{tpu_custom_call.1} parent=55 // pred_region
          %s1707 = ssub.s32 16, 16
          %1708 = vsyncadd %s1700, %s1707
          %s1709 = sadd.s32 %s30, %s29
          %s1710 = smul.addr %s1709, 16
          %s1711 = scalar_lea.hbm %s9, %s1710
          %s1713 = sshll.u32 %s1702, 4
          %s1714 = int_to_ptr.vmem [resolvable:$true] %s1713
          %1716 = dma.vmem_to_hbm [thread:$0]  %s1714, 16, %s1711, %s1700
        $region60: #{tpu_custom_call.1} parent=55 // pred_fallthru
          _
      $region56: #{tpu_custom_call.1} parent=5 // pred_fallthru
        _
      %p1717 = scmp.le.s32.totalorder 2, %s20
      // Predicated region
      $region61: #{tpu_custom_call.1} parent=5 // pred_check
        %p1718 = pneg %p1717
      $region62: #{tpu_custom_call.1} parent=5 // pred_check_branch
        %1720 = sbr.rel (%p1718) target = $region64
      $region63: #{tpu_custom_call.1} parent=5 // pred_region
        %s1721 = ssub.s32 %s20, 2
        // Predicated region
        $region65: #{tpu_custom_call.1} parent=63 // pred_check
          %p1722 = pneg %p264
        $region66: #{tpu_custom_call.1} parent=63 // pred_check_branch
          %1724 = sbr.rel (%p1722) target = $region68
        $region67: #{tpu_custom_call.1} parent=63 // pred_region
          %s1725 = sand.u32 %s249, 1
          %s1726 = scalar_lea.sflag [#allocation4], %s1725
          %s1727 = sand.u32 %s249, 1
          %s1728 = scalar_lea.vmem [#allocation3], %s1727
          %1729 = dma.done %s1726, 16
        $region68: #{tpu_custom_call.1} parent=63 // pred_fallthru
          _
      $region64: #{tpu_custom_call.1} parent=5 // pred_fallthru
        _
    $region6: #{tpu_custom_call.1} parent=1 // loop_footer
      %s24 = sadd.s32 1, %s20
    $region7: #{tpu_custom_call.1} parent=1 // loop_footer_branch
      %19 = sbr.rel target = $region3
    $region8: #{tpu_custom_call.1} parent=1 // loop_exit
      _
    %1730 = vsyncpa [#allocation4], 1
    %s1731 = scalar_lea.sflag [#allocation4], 1
    %1732 = vsyncpa %s1731, 1

</llo_original>
